<compile_context>
chip_gen: v5e
topology: v5e:2x2
jax: 0.10.0
libtpu: 0.0.40
codegen_flags: <defaults>
</compile_context>

<pallas_src>
import functools
import math

import jax
import jax.numpy as jnp
from jax.experimental import pallas as pl
from jax.experimental.pallas import tpu as pltpu

LANE = 128
SUBLANE = 8

# Max tile sizes for the tiled linear. Re-derived against v7x's 64 MiB physical /
# 32 MiB default scoped VMEM: 2 inputs x 2 double-buffers x tile + acc stays ~5 MiB.
TM_MAX = 256
TN_MAX = 512
TK_MAX = 512
VMEM_LIMIT = 32 * 1024 * 1024


def _round_up(x, m):
    return (x + m - 1) // m * m


def _pick_tile(dim, max_t, align):
    """Largest tile <= max_t that divides dim and is a multiple of align
    (falls back to the full dim, which BlockSpec always accepts)."""
    if dim <= max_t:
        return dim
    t = (max_t // align) * align
    while t >= align:
        if dim % t == 0:
            return t
        t -= align
    return dim


# --------------------------- fused tiled linear -----------------------------

def _make_linear_kernel(*, has_ln, ln_true_k, ln_eps, activation, has_res):
    def kernel(*refs):
        i = 0
        x_ref = refs[i]; i += 1
        w_ref = refs[i]; i += 1
        b_ref = refs[i]; i += 1
        if has_ln:
            g_ref, bt_ref = refs[i], refs[i + 1]; i += 2
        if has_res:
            r_ref = refs[i]; i += 1
        o_ref, acc_ref = refs[i], refs[i + 1]

        k_idx = pl.program_id(2)

        @pl.when(k_idx == 0)
        def _():
            acc_ref[...] = jnp.zeros_like(acc_ref)

        x = x_ref[...]                       # f32 (tm, tk)
        if has_ln:
            # LayerNorm prologue (full feature row is resident in this K block).
            # Padded feature columns are masked out of the statistics; gamma/beta
            # are zero-padded so padded output columns stay exactly zero.
            inv_k = 1.0 / float(ln_true_k)
            if ln_true_k < x.shape[-1]:
                mask = jax.lax.broadcasted_iota(jnp.int32, x.shape, 1) < ln_true_k
                x = jnp.where(mask, x, 0.0)
            mu = jnp.sum(x, axis=-1, keepdims=True) * inv_k
            xc = x - mu
            if ln_true_k < x.shape[-1]:
                xc = jnp.where(mask, xc, 0.0)
            var = jnp.sum(xc * xc, axis=-1, keepdims=True) * inv_k
            x = xc * jax.lax.rsqrt(var + ln_eps) * g_ref[...] + bt_ref[...]

        # bf16 at the MXU, f32 accumulation.
        acc_ref[...] += jnp.dot(x.astype(jnp.bfloat16), w_ref[...],
                                preferred_element_type=jnp.float32)

        @pl.when(k_idx == pl.num_programs(2) - 1)
        def _():
            y = acc_ref[...] + b_ref[...]     # bias only once, in the epilogue
            if activation == "gelu":
                # TODO(synk): PyTorch nn.GELU default is the exact erf form;
                # the tanh approximation is used here (clean EUP lowering).
                y = jax.nn.gelu(y, approximate=True)
            if has_res:
                y = y + r_ref[...]            # residual fused into the epilogue
            o_ref[...] = y.astype(o_ref.dtype)

    return kernel


def fused_linear(x, w, b, *, gamma=None, beta=None, residual=None,
                 activation=None, ln_eps=1e-6, ln_true_k=None):
    """y = [residual +] act(LN?(x) @ w + b).

    x: [M, K] f32, w: [K, N] bf16, b: [N] f32, residual: [M, N] f32.
    gamma/beta: [K] f32 -> LayerNorm fused as a matmul prologue (K kept in a
    single block so every row is fully resident).
    """
    M, K = x.shape
    Kw, N = w.shape
    assert K == Kw, (K, Kw)
    has_ln = gamma is not None
    has_res = residual is not None

    tm = _pick_tile(M, TM_MAX, SUBLANE)
    tn = _pick_tile(N, TN_MAX, LANE)
    tk = K if has_ln else _pick_tile(K, TK_MAX, LANE)
    grid = (M // tm, N // tn, K // tk)

    in_specs = [
        pl.BlockSpec((tm, tk), lambda i, j, k: (i, k)),
        pl.BlockSpec((tk, tn), lambda i, j, k: (k, j)),
        pl.BlockSpec((1, tn), lambda i, j, k: (0, j)),     # bias: per-N tile only
    ]
    args = [x, w, b.reshape(1, N)]
    if has_ln:
        in_specs += [pl.BlockSpec((1, tk), lambda i, j, k: (0, k))] * 2
        args += [gamma.reshape(1, K), beta.reshape(1, K)]
    if has_res:
        in_specs.append(pl.BlockSpec((tm, tn), lambda i, j, k: (i, j)))
        args.append(residual)

    kernel = _make_linear_kernel(
        has_ln=has_ln, ln_true_k=(ln_true_k if ln_true_k is not None else K),
        ln_eps=ln_eps, activation=activation, has_res=has_res)

    return pl.pallas_call(
        kernel,
        out_shape=jax.ShapeDtypeStruct((M, N), jnp.float32),
        grid=grid,
        in_specs=in_specs,
        out_specs=pl.BlockSpec((tm, tn), lambda i, j, k: (i, j)),
        scratch_shapes=[pltpu.VMEM((tm, tn), jnp.float32)],
        compiler_params=pltpu.CompilerParams(
            dimension_semantics=("parallel", "parallel", "arbitrary"),
            vmem_limit_bytes=VMEM_LIMIT),
    )(*args)


# -------------------------------- attention ---------------------------------

def _attention_kernel(qkv_ref, o_ref, *, heads, dh_pad, s_true):
    # qkv_ref: [1, S_pad, 3*heads*dh_pad]. Each head's q/k/v occupies its own
    # lane-aligned dh_pad-wide slot (zero-padded beyond the true head_dim), so
    # every contraction feeds the MXU with a full 128-lane dimension and every
    # store is unmasked. 1/sqrt(Dh) is pre-folded into the Q projection.
    s_pad = qkv_ref.shape[1]
    key_mask = jax.lax.broadcasted_iota(jnp.int32, (s_pad, s_pad), 1) < s_true
    for h in range(heads):
        q_off = (0 * heads + h) * dh_pad
        k_off = (1 * heads + h) * dh_pad
        v_off = (2 * heads + h) * dh_pad
        q = qkv_ref[0, :, q_off:q_off + dh_pad].astype(jnp.bfloat16)
        k = qkv_ref[0, :, k_off:k_off + dh_pad].astype(jnp.bfloat16)
        v = qkv_ref[0, :, v_off:v_off + dh_pad].astype(jnp.bfloat16)
        s = jax.lax.dot_general(q, k, (((1,), (1,)), ((), ())),
                                preferred_element_type=jnp.float32)
        s = jnp.where(key_mask, s, -1e30)          # mask padded key positions
        s = s - jnp.max(s, axis=-1, keepdims=True)
        p = jnp.exp(s)
        p = p * pl.reciprocal(jnp.sum(p, axis=-1, keepdims=True), approx=True)
        o = jnp.dot(p.astype(jnp.bfloat16), v, preferred_element_type=jnp.float32)
        o_ref[0, :, h * dh_pad:(h + 1) * dh_pad] = o.astype(o_ref.dtype)


def attention(qkv, *, heads, dh_pad, s_true):
    """qkv: [B, S_pad, 3*heads*dh_pad] -> [B, S_pad, heads*dh_pad]."""
    # TODO(synk): for long sequences block the KV axis flash-style (online softmax
    # with m/l/acc scratch) instead of materializing the full S x S score matrix.
    B, s_pad, n3 = qkv.shape
    n_out = heads * dh_pad
    return pl.pallas_call(
        functools.partial(_attention_kernel, heads=heads, dh_pad=dh_pad,
                          s_true=s_true),
        out_shape=jax.ShapeDtypeStruct((B, s_pad, n_out), jnp.float32),
        grid=(B,),
        in_specs=[pl.BlockSpec((1, s_pad, n3), lambda b: (b, 0, 0))],
        out_specs=pl.BlockSpec((1, s_pad, n_out), lambda b: (b, 0, 0)),
        compiler_params=pltpu.CompilerParams(
            dimension_semantics=("parallel",),
            vmem_limit_bytes=VMEM_LIMIT),
    )(qkv)


# ---------------------- Quant / DeQuant stubs (identity) --------------------

def quant(x):
    return x  # QuantStub is identity before torch.ao.quantization.convert


def dequant(x):
    return x  # DeQuantStub is identity before convert


# ------------------------------ Model params --------------------------------

def init_params(key, *, C, P, hidden, heads, mlp_dim, num_classes, num_patches):
    """Raw (unpadded, f32) parameters mirroring the PyTorch module."""
    del heads
    ks = jax.random.split(key, 16)
    std = 0.02
    n = lambda k, shape: (std * jax.random.normal(k, shape)).astype(jnp.float32)
    z = lambda shape: jnp.zeros(shape, jnp.float32)
    o = lambda shape: jnp.ones(shape, jnp.float32)
    return {
        # patch embedding == conv(C->hidden, kernel=P, stride=P)
        "patch_w": n(ks[0], (C * P * P, hidden)), "patch_b": z((hidden,)),
        "cls": n(ks[1], (1, 1, hidden)),
        "pos": n(ks[2], (1, num_patches + 1, hidden)),
        # encoder block
        "ln1_g": o((hidden,)), "ln1_b": z((hidden,)),
        "wq": n(ks[3], (hidden, hidden)), "bq": z((hidden,)),
        "wk": n(ks[4], (hidden, hidden)), "bk": z((hidden,)),
        "wv": n(ks[5], (hidden, hidden)), "bv": z((hidden,)),
        "wo": n(ks[6], (hidden, hidden)), "bo": z((hidden,)),
        "ln2_g": o((hidden,)), "ln2_b": z((hidden,)),
        "mlp_w1": n(ks[7], (hidden, mlp_dim)), "mlp_b1": z((mlp_dim,)),
        "mlp_w2": n(ks[8], (mlp_dim, hidden)), "mlp_b2": z((hidden,)),
        # final encoder layernorm
        "lnf_g": o((hidden,)), "lnf_b": z((hidden,)),
        # classifier head
        "cls_w": n(ks[9], (hidden, num_classes)), "cls_b": z((num_classes,)),
    }


def prepare_params(p, *, heads):
    """Pad feature dims to 128 lanes, fuse Q/K/V into one weight with per-head
    lane-aligned slots, pre-scale Q by 1/sqrt(Dh), cast matmul weights to bf16."""
    Dm = p["patch_w"].shape[1]
    Dh = Dm // heads
    dm_pad = _round_up(Dm, LANE)
    dh_pad = _round_up(Dh, LANE)
    mlp = p["mlp_w1"].shape[1]
    mlp_pad = _round_up(mlp, LANE)
    nc = p["cls_w"].shape[1]
    nc_pad = _round_up(nc, LANE)
    kin = p["patch_w"].shape[0]
    kin_pad = _round_up(kin, LANE)
    S = p["pos"].shape[1]
    s_pad = _round_up(S, SUBLANE)

    def pad2(w, kp, np_):
        return jnp.zeros((kp, np_), jnp.float32).at[:w.shape[0], :w.shape[1]].set(w)

    def pad1(v, np_):
        return jnp.zeros((np_,), jnp.float32).at[:v.shape[0]].set(v)

    scale = 1.0 / math.sqrt(Dh)

    # Fused QKV weight: output columns [Q_h0 | Q_h1 | ... | K_h0 | ... | V_h...],
    # each head in a lane-aligned dh_pad-wide slot, zero-padded beyond Dh.
    wqkv = jnp.zeros((dm_pad, 3 * heads * dh_pad), jnp.float32)
    bqkv = jnp.zeros((3 * heads * dh_pad,), jnp.float32)
    for h in range(heads):
        sl = slice(h * Dh, (h + 1) * Dh)
        qo = (0 * heads + h) * dh_pad
        ko = (1 * heads + h) * dh_pad
        vo = (2 * heads + h) * dh_pad
        wqkv = wqkv.at[:Dm, qo:qo + Dh].set(p["wq"][:, sl] * scale)
        wqkv = wqkv.at[:Dm, ko:ko + Dh].set(p["wk"][:, sl])
        wqkv = wqkv.at[:Dm, vo:vo + Dh].set(p["wv"][:, sl])
        bqkv = bqkv.at[qo:qo + Dh].set(p["bq"][sl] * scale)
        bqkv = bqkv.at[ko:ko + Dh].set(p["bk"][sl])
        bqkv = bqkv.at[vo:vo + Dh].set(p["bv"][sl])

    # Output projection: input rows re-laid-out into the same per-head slots.
    wo = jnp.zeros((heads * dh_pad, dm_pad), jnp.float32)
    for h in range(heads):
        wo = wo.at[h * dh_pad:h * dh_pad + Dh, :Dm].set(p["wo"][h * Dh:(h + 1) * Dh, :])

    cls_pad = jnp.zeros((1, 1, dm_pad), jnp.float32).at[:, :, :Dm].set(p["cls"])
    pos_pad = jnp.zeros((1, s_pad, dm_pad), jnp.float32).at[:, :S, :Dm].set(p["pos"])

    return {
        "patch_w": pad2(p["patch_w"], kin_pad, dm_pad).astype(jnp.bfloat16),
        "patch_b": pad1(p["patch_b"], dm_pad),
        "cls": cls_pad, "pos": pos_pad,
        "ln1_g": pad1(p["ln1_g"], dm_pad), "ln1_b": pad1(p["ln1_b"], dm_pad),
        "wqkv": wqkv.astype(jnp.bfloat16), "bqkv": bqkv,
        "wo": wo.astype(jnp.bfloat16), "bo": pad1(p["bo"], dm_pad),
        "ln2_g": pad1(p["ln2_g"], dm_pad), "ln2_b": pad1(p["ln2_b"], dm_pad),
        "mlp_w1": pad2(p["mlp_w1"], dm_pad, mlp_pad).astype(jnp.bfloat16),
        "mlp_b1": pad1(p["mlp_b1"], mlp_pad),
        "mlp_w2": pad2(p["mlp_w2"], mlp_pad, dm_pad).astype(jnp.bfloat16),
        "mlp_b2": pad1(p["mlp_b2"], dm_pad),
        "lnf_g": pad1(p["lnf_g"], dm_pad), "lnf_b": pad1(p["lnf_b"], dm_pad),
        "cls_w": pad2(p["cls_w"], dm_pad, nc_pad).astype(jnp.bfloat16),
        "cls_b": pad1(p["cls_b"], nc_pad),
    }


# ------------------------------ ViT forward ----------------------------------

def build_forward(cfg):
    P = cfg["P"]; heads = cfg["heads"]
    Dm = cfg["Dm"]; dm_pad = cfg["dm_pad"]; dh_pad = cfg["dh_pad"]
    S = cfg["S"]; s_pad = cfg["s_pad"]
    nc = cfg["num_classes"]
    # NOTE: 1e-6 as in torchvision ViT; PyTorch nn.LayerNorm default is 1e-5.
    ln_eps = cfg["ln_eps"]

    def vit_encoder(params, x):
        B, C, H, W = x.shape
        Hp, Wp = H // P, W // P
        # non-overlapping patch extraction (== conv k=stride=P); layout glue
        # (reshape/transpose) stays outside the kernels but inside jit.
        patches = (x.reshape(B, C, Hp, P, Wp, P)
                    .transpose(0, 2, 4, 1, 3, 5)
                    .reshape(B * Hp * Wp, C * P * P))
        kin_w = params["patch_w"].shape[0]
        if kin_w != patches.shape[1]:
            patches = jnp.pad(patches, ((0, 0), (0, kin_w - patches.shape[1])))
        emb = fused_linear(patches, params["patch_w"], params["patch_b"])
        emb = emb.reshape(B, Hp * Wp, dm_pad)

        cls_tok = jnp.broadcast_to(params["cls"], (B, 1, dm_pad))
        tok = jnp.concatenate([cls_tok, emb], axis=1)            # [B, S, dm_pad]
        tok = jnp.pad(tok, ((0, 0), (0, s_pad - S), (0, 0))) + params["pos"]
        t2d = tok.reshape(B * s_pad, dm_pad)

        # --- encoder block (pre-norm); LN1 fused as the QKV-matmul prologue ---
        qkv = fused_linear(t2d, params["wqkv"], params["bqkv"],
                           gamma=params["ln1_g"], beta=params["ln1_b"],
                           ln_true_k=Dm, ln_eps=ln_eps)
        qkv = qkv.reshape(B, s_pad, 3 * heads * dh_pad)
        attn = attention(qkv, heads=heads, dh_pad=dh_pad, s_true=S)
        attn2d = attn.reshape(B * s_pad, heads * dh_pad)
        # output projection with the residual folded into the epilogue
        tok2d = fused_linear(attn2d, params["wo"], params["bo"], residual=t2d)

        # --- MLP; LN2 fused as prologue, GELU + residual fused as epilogues ---
        h1 = fused_linear(tok2d, params["mlp_w1"], params["mlp_b1"],
                          gamma=params["ln2_g"], beta=params["ln2_b"],
                          ln_true_k=Dm, ln_eps=ln_eps, activation="gelu")
        tok2d = fused_linear(h1, params["mlp_w2"], params["mlp_b2"],
                             residual=tok2d)
        return tok2d    # final encoder LN is fused into the classifier prologue

    def forward(params, x):
        # mirrors QuantizedModel.forward; quant/dequant are identity pre-convert
        x = quant(x)
        seq2d = vit_encoder(params, x)        # self.model.vit(x)
        seq2d = dequant(seq2d)
        seq2d = quant(seq2d)
        # classifier applied per token (matches the reference forward, which runs
        # nn.Linear on the full ViT sequence output); final LN fused as prologue.
        logits = fused_linear(seq2d, params["cls_w"], params["cls_b"],
                              gamma=params["lnf_g"], beta=params["lnf_b"],
                              ln_true_k=Dm, ln_eps=ln_eps)
        B = x.shape[0]
        logits = logits.reshape(B, s_pad, -1)[:, :S, :nc]   # drop padding
        logits = dequant(logits)
        return logits

    return forward


# ---------------------------------- main -------------------------------------

if __name__ == "__main__":
    B, C, H, W = 2, 4, 16, 16
    P = 8
    hidden, heads, mlp_dim, num_classes = 32, 2, 64, 10
    num_patches = (H // P) * (W // P)
    S = num_patches + 1

    key = jax.random.PRNGKey(0)
    k_x, k_p = jax.random.split(key)
    x = jax.random.normal(k_x, (B, C, H, W), dtype=jnp.float32)

    raw = init_params(k_p, C=C, P=P, hidden=hidden, heads=heads,
                      mlp_dim=mlp_dim, num_classes=num_classes,
                      num_patches=num_patches)
    params = prepare_params(raw, heads=heads)

    cfg = dict(P=P, heads=heads,
               Dm=hidden, dm_pad=_round_up(hidden, LANE),
               dh_pad=_round_up(hidden // heads, LANE),
               S=S, s_pad=_round_up(S, SUBLANE),
               num_classes=num_classes, ln_eps=1e-6)

    fwd = jax.jit(build_forward(cfg))
    out = jax.block_until_ready(fwd(params, x))
    assert out.shape == (B, S, num_classes), out.shape
    assert bool(jnp.all(jnp.isfinite(out)))
    print("KERNEL_OK")
</pallas_src>

<mosaic_0001>
module attributes {stable_mosaic.version = 11 : i64} {
  func.func @kernel(%arg0: i32, %arg1: i32, %arg2: i32, %arg3: memref<16x128xf32, #tpu.memory_space<vmem>>, %arg4: memref<128x384xbf16, #tpu.memory_space<vmem>>, %arg5: memref<1x384xf32, #tpu.memory_space<vmem>>, %arg6: memref<1x128xf32, #tpu.memory_space<vmem>>, %arg7: memref<1x128xf32, #tpu.memory_space<vmem>>, %arg8: memref<16x384xf32, #tpu.memory_space<vmem>>, %arg9: memref<16x384xf32, #tpu.memory_space<vmem>>) attributes {dimension_semantics = [#tpu.dimension_semantics<parallel>, #tpu.dimension_semantics<parallel>, #tpu.dimension_semantics<arbitrary>], iteration_bounds = array<i64: 1, 2, 1>, scalar_prefetch = 0 : i64, scratch_operands = 1 : i64, tpu.core_type = #tpu.core_type<tc>, window_params = [{transform_indices = @transform_0, window_bounds = array<i64: 16, 128>}, {transform_indices = @transform_1, window_bounds = array<i64: 128, 384>}, {transform_indices = @transform_2, window_bounds = array<i64: 1, 384>}, {transform_indices = @transform_3, window_bounds = array<i64: 1, 128>}, {transform_indices = @transform_4, window_bounds = array<i64: 1, 128>}, {transform_indices = @transform_5, window_bounds = array<i64: 16, 384>}]} {
    %c0_i32 = arith.constant 0 : i32
    %0 = arith.cmpi eq, %arg2, %c0_i32 : i32
    %1 = arith.extui %0 : i1 to i32
    %c0_i32_0 = arith.constant 0 : i32
    %2 = arith.cmpi ne, %1, %c0_i32_0 : i32
    scf.if %2 {
      %cst_21 = arith.constant 0.000000e+00 : f32
      %42 = vector.broadcast %cst_21 : f32 to vector<16x384xf32>
      %c0_22 = arith.constant 0 : index
      %c0_23 = arith.constant 0 : index
      %43 = vector.load %arg9[%c0_22, %c0_23] : memref<16x384xf32, #tpu.memory_space<vmem>>, vector<16x384xf32>
      tpu.vector_store %arg9[%c0_22, %c0_23], %42 {strides = array<i32>} : memref<16x384xf32, #tpu.memory_space<vmem>>, vector<16x384xf32>,
    } else {
    }
    %c0 = arith.constant 0 : index
    %c0_1 = arith.constant 0 : index
    %3 = vector.load %arg3[%c0, %c0_1] : memref<16x128xf32, #tpu.memory_space<vmem>>, vector<16x128xf32>
    %4 = tpu.iota {dimensions = array<i32: 1>} : vector<16x128xi32>
    %c32_i32 = arith.constant 32 : i32
    %5 = vector.broadcast %c32_i32 : i32 to vector<16x128xi32>
    %6 = arith.cmpi slt, %4, %5 : vector<16x128xi32>
    %cst = arith.constant 0.000000e+00 : f32
    %7 = vector.broadcast %cst : f32 to vector<16x128xf32>
    %8 = arith.select %6, %3, %7 : vector<16x128xi1>, vector<16x128xf32>
    %cst_2 = arith.constant dense<0.000000e+00> : vector<16xf32>
    %9 = vector.multi_reduction <add>, %8, %cst_2 [1] : vector<16x128xf32> to vector<16xf32>
    %10 = vector.shape_cast %9 : vector<16xf32> to vector<16x1xf32>
    %cst_3 = arith.constant 3.125000e-02 : f32
    %11 = vector.broadcast %cst_3 : f32 to vector<16x1xf32>
    %12 = arith.mulf %10, %11 : vector<16x1xf32>
    %13 = vector.broadcast %12 : vector<16x1xf32> to vector<16x128xf32>
    %14 = arith.subf %8, %13 : vector<16x128xf32>
    %cst_4 = arith.constant 0.000000e+00 : f32
    %15 = vector.broadcast %cst_4 : f32 to vector<16x128xf32>
    %16 = arith.select %6, %14, %15 : vector<16x128xi1>, vector<16x128xf32>
    %17 = arith.mulf %16, %16 : vector<16x128xf32>
    %cst_5 = arith.constant dense<0.000000e+00> : vector<16xf32>
    %18 = vector.multi_reduction <add>, %17, %cst_5 [1] : vector<16x128xf32> to vector<16xf32>
    %19 = vector.shape_cast %18 : vector<16xf32> to vector<16x1xf32>
    %cst_6 = arith.constant 3.125000e-02 : f32
    %20 = vector.broadcast %cst_6 : f32 to vector<16x1xf32>
    %21 = arith.mulf %19, %20 : vector<16x1xf32>
    %cst_7 = arith.constant 9.99999997E-7 : f32
    %22 = vector.broadcast %cst_7 : f32 to vector<16x1xf32>
    %23 = arith.addf %21, %22 : vector<16x1xf32>
    %24 = math.rsqrt %23 : vector<16x1xf32>
    %25 = vector.broadcast %24 : vector<16x1xf32> to vector<16x128xf32>
    %26 = arith.mulf %16, %25 : vector<16x128xf32>
    %c0_8 = arith.constant 0 : index
    %c0_9 = arith.constant 0 : index
    %27 = vector.load %arg6[%c0_8, %c0_9] : memref<1x128xf32, #tpu.memory_space<vmem>>, vector<1x128xf32>
    %28 = vector.broadcast %27 : vector<1x128xf32> to vector<16x128xf32>
    %29 = arith.mulf %26, %28 : vector<16x128xf32>
    %c0_10 = arith.constant 0 : index
    %c0_11 = arith.constant 0 : index
    %30 = vector.load %arg7[%c0_10, %c0_11] : memref<1x128xf32, #tpu.memory_space<vmem>>, vector<1x128xf32>
    %31 = vector.broadcast %30 : vector<1x128xf32> to vector<16x128xf32>
    %32 = arith.addf %29, %31 : vector<16x128xf32>
    %c0_12 = arith.constant 0 : index
    %c0_13 = arith.constant 0 : index
    %33 = vector.load %arg9[%c0_12, %c0_13] : memref<16x384xf32, #tpu.memory_space<vmem>>, vector<16x384xf32>
    %34 = arith.truncf %32 : vector<16x128xf32> to vector<16x128xbf16>
    %c0_14 = arith.constant 0 : index
    %c0_15 = arith.constant 0 : index
    %35 = vector.load %arg4[%c0_14, %c0_15] : memref<128x384xbf16, #tpu.memory_space<vmem>>, vector<128x384xbf16>
    %cst_16 = arith.constant dense<0.000000e+00> : vector<16x384xf32>
    %36 = tpu.matmul %34, %35, %cst_16 {dimension_numbers = #tpu.dot_dimension_numbers<[1], [0], [0], [1], [0, 0, 1, 1], [], []>} : vector<16x128xbf16>, vector<128x384xbf16>, vector<16x384xf32> -> vector<16x384xf32>
    %37 = arith.addf %33, %36 : vector<16x384xf32>
    %c0_17 = arith.constant 0 : index
    %c0_18 = arith.constant 0 : index
    %38 = vector.load %arg9[%c0_17, %c0_18] : memref<16x384xf32, #tpu.memory_space<vmem>>, vector<16x384xf32>
    tpu.vector_store %arg9[%c0_17, %c0_18], %37 {strides = array<i32>} : memref<16x384xf32, #tpu.memory_space<vmem>>, vector<16x384xf32>,
    %c0_i32_19 = arith.constant 0 : i32
    %39 = arith.cmpi eq, %arg2, %c0_i32_19 : i32
    %40 = arith.extui %39 : i1 to i32
    %c0_i32_20 = arith.constant 0 : i32
    %41 = arith.cmpi ne, %40, %c0_i32_20 : i32
    scf.if %41 {
      %c0_21 = arith.constant 0 : index
      %c0_22 = arith.constant 0 : index
      %42 = vector.load %arg9[%c0_21, %c0_22] : memref<16x384xf32, #tpu.memory_space<vmem>>, vector<16x384xf32>
      %c0_23 = arith.constant 0 : index
      %c0_24 = arith.constant 0 : index
      %43 = vector.load %arg5[%c0_23, %c0_24] : memref<1x384xf32, #tpu.memory_space<vmem>>, vector<1x384xf32>
      %44 = vector.broadcast %43 : vector<1x384xf32> to vector<16x384xf32>
      %45 = arith.addf %42, %44 : vector<16x384xf32>
      %c0_25 = arith.constant 0 : index
      %c0_26 = arith.constant 0 : index
      %46 = vector.load %arg8[%c0_25, %c0_26] : memref<16x384xf32, #tpu.memory_space<vmem>>, vector<16x384xf32>
      tpu.vector_store %arg8[%c0_25, %c0_26], %45 {strides = array<i32>} : memref<16x384xf32, #tpu.memory_space<vmem>>, vector<16x384xf32>,
    } else {
    }
    return
  }
  func.func @transform_0(%arg0: i32, %arg1: i32, %arg2: i32) -> (i32, i32) {
    %c0_i32 = arith.constant 0 : i32
    return %arg0, %arg2 : i32, i32
  }
  func.func @transform_1(%arg0: i32, %arg1: i32, %arg2: i32) -> (i32, i32) {
    %c0_i32 = arith.constant 0 : i32
    return %arg2, %arg1 : i32, i32
  }
  func.func @transform_2(%arg0: i32, %arg1: i32, %arg2: i32) -> (i32, i32) {
    %c0_i32 = arith.constant 0 : i32
    %c0_i32_0 = arith.constant 0 : i32
    return %c0_i32, %arg1 : i32, i32
  }
  func.func @transform_3(%arg0: i32, %arg1: i32, %arg2: i32) -> (i32, i32) {
    %c0_i32 = arith.constant 0 : i32
    %c0_i32_0 = arith.constant 0 : i32
    return %c0_i32, %arg2 : i32, i32
  }
  func.func @transform_4(%arg0: i32, %arg1: i32, %arg2: i32) -> (i32, i32) {
    %c0_i32 = arith.constant 0 : i32
    %c0_i32_0 = arith.constant 0 : i32
    return %c0_i32, %arg2 : i32, i32
  }
  func.func @transform_5(%arg0: i32, %arg1: i32, %arg2: i32) -> (i32, i32) {
    %c0_i32 = arith.constant 0 : i32
    return %arg0, %arg1 : i32, i32
  }
}

module attributes {stable_mosaic.version = 11 : i64} {
  func.func @kernel(%arg0: i32, %arg1: i32, %arg2: i32, %arg3: memref<8x256xf32, #tpu.memory_space<vmem>>, %arg4: memref<256x128xbf16, #tpu.memory_space<vmem>>, %arg5: memref<1x128xf32, #tpu.memory_space<vmem>>, %arg6: memref<8x128xf32, #tpu.memory_space<vmem>>, %arg7: memref<8x128xf32, #tpu.memory_space<vmem>>) attributes {dimension_semantics = [#tpu.dimension_semantics<parallel>, #tpu.dimension_semantics<parallel>, #tpu.dimension_semantics<arbitrary>], iteration_bounds = array<i64: 1, 1, 1>, scalar_prefetch = 0 : i64, scratch_operands = 1 : i64, tpu.core_type = #tpu.core_type<tc>, window_params = [{transform_indices = @transform_0, window_bounds = array<i64: 8, 256>}, {transform_indices = @transform_1, window_bounds = array<i64: 256, 128>}, {transform_indices = @transform_2, window_bounds = array<i64: 1, 128>}, {transform_indices = @transform_3, window_bounds = array<i64: 8, 128>}]} {
    %c0_i32 = arith.constant 0 : i32
    %0 = arith.cmpi eq, %arg2, %c0_i32 : i32
    %1 = arith.extui %0 : i1 to i32
    %c0_i32_0 = arith.constant 0 : i32
    %2 = arith.cmpi ne, %1, %c0_i32_0 : i32
    scf.if %2 {
      %cst_10 = arith.constant 0.000000e+00 : f32
      %13 = vector.broadcast %cst_10 : f32 to vector<8x128xf32>
      %c0_11 = arith.constant 0 : index
      %c0_12 = arith.constant 0 : index
      %14 = vector.load %arg7[%c0_11, %c0_12] : memref<8x128xf32, #tpu.memory_space<vmem>>, vector<8x128xf32>
      tpu.vector_store %arg7[%c0_11, %c0_12], %13 {strides = array<i32>} : memref<8x128xf32, #tpu.memory_space<vmem>>, vector<8x128xf32>,
    } else {
    }
    %c0 = arith.constant 0 : index
    %c0_1 = arith.constant 0 : index
    %3 = vector.load %arg3[%c0, %c0_1] : memref<8x256xf32, #tpu.memory_space<vmem>>, vector<8x256xf32>
    %c0_2 = arith.constant 0 : index
    %c0_3 = arith.constant 0 : index
    %4 = vector.load %arg7[%c0_2, %c0_3] : memref<8x128xf32, #tpu.memory_space<vmem>>, vector<8x128xf32>
    %5 = arith.truncf %3 : vector<8x256xf32> to vector<8x256xbf16>
    %c0_4 = arith.constant 0 : index
    %c0_5 = arith.constant 0 : index
    %6 = vector.load %arg4[%c0_4, %c0_5] : memref<256x128xbf16, #tpu.memory_space<vmem>>, vector<256x128xbf16>
    %cst = arith.constant dense<0.000000e+00> : vector<8x128xf32>
    %7 = tpu.matmul %5, %6, %cst {dimension_numbers = #tpu.dot_dimension_numbers<[1], [0], [0], [1], [0, 0, 1, 1], [], []>} : vector<8x256xbf16>, vector<256x128xbf16>, vector<8x128xf32> -> vector<8x128xf32>
    %8 = arith.addf %4, %7 : vector<8x128xf32>
    %c0_6 = arith.constant 0 : index
    %c0_7 = arith.constant 0 : index
    %9 = vector.load %arg7[%c0_6, %c0_7] : memref<8x128xf32, #tpu.memory_space<vmem>>, vector<8x128xf32>
    tpu.vector_store %arg7[%c0_6, %c0_7], %8 {strides = array<i32>} : memref<8x128xf32, #tpu.memory_space<vmem>>, vector<8x128xf32>,
    %c0_i32_8 = arith.constant 0 : i32
    %10 = arith.cmpi eq, %arg2, %c0_i32_8 : i32
    %11 = arith.extui %10 : i1 to i32
    %c0_i32_9 = arith.constant 0 : i32
    %12 = arith.cmpi ne, %11, %c0_i32_9 : i32
    scf.if %12 {
      %c0_10 = arith.constant 0 : index
      %c0_11 = arith.constant 0 : index
      %13 = vector.load %arg7[%c0_10, %c0_11] : memref<8x128xf32, #tpu.memory_space<vmem>>, vector<8x128xf32>
      %c0_12 = arith.constant 0 : index
      %c0_13 = arith.constant 0 : index
      %14 = vector.load %arg5[%c0_12, %c0_13] : memref<1x128xf32, #tpu.memory_space<vmem>>, vector<1x128xf32>
      %15 = vector.broadcast %14 : vector<1x128xf32> to vector<8x128xf32>
      %16 = arith.addf %13, %15 : vector<8x128xf32>
      %c0_14 = arith.constant 0 : index
      %c0_15 = arith.constant 0 : index
      %17 = vector.load %arg6[%c0_14, %c0_15] : memref<8x128xf32, #tpu.memory_space<vmem>>, vector<8x128xf32>
      tpu.vector_store %arg6[%c0_14, %c0_15], %16 {strides = array<i32>} : memref<8x128xf32, #tpu.memory_space<vmem>>, vector<8x128xf32>,
    } else {
    }
    return
  }
  func.func @transform_0(%arg0: i32, %arg1: i32, %arg2: i32) -> (i32, i32) {
    %c0_i32 = arith.constant 0 : i32
    return %arg0, %arg2 : i32, i32
  }
  func.func @transform_1(%arg0: i32, %arg1: i32, %arg2: i32) -> (i32, i32) {
    %c0_i32 = arith.constant 0 : i32
    return %arg2, %arg1 : i32, i32
  }
  func.func @transform_2(%arg0: i32, %arg1: i32, %arg2: i32) -> (i32, i32) {
    %c0_i32 = arith.constant 0 : i32
    %c0_i32_0 = arith.constant 0 : i32
    return %c0_i32, %arg1 : i32, i32
  }
  func.func @transform_3(%arg0: i32, %arg1: i32, %arg2: i32) -> (i32, i32) {
    %c0_i32 = arith.constant 0 : i32
    return %arg0, %arg1 : i32, i32
  }
}

module attributes {stable_mosaic.version = 11 : i64} {
  func.func @kernel(%arg0: i32, %arg1: i32, %arg2: i32, %arg3: memref<16x256xf32, #tpu.memory_space<vmem>>, %arg4: memref<256x128xbf16, #tpu.memory_space<vmem>>, %arg5: memref<1x128xf32, #tpu.memory_space<vmem>>, %arg6: memref<16x128xf32, #tpu.memory_space<vmem>>, %arg7: memref<16x128xf32, #tpu.memory_space<vmem>>, %arg8: memref<16x128xf32, #tpu.memory_space<vmem>>) attributes {dimension_semantics = [#tpu.dimension_semantics<parallel>, #tpu.dimension_semantics<parallel>, #tpu.dimension_semantics<arbitrary>], iteration_bounds = array<i64: 1, 1, 1>, scalar_prefetch = 0 : i64, scratch_operands = 1 : i64, tpu.core_type = #tpu.core_type<tc>, window_params = [{transform_indices = @transform_0, window_bounds = array<i64: 16, 256>}, {transform_indices = @transform_1, window_bounds = array<i64: 256, 128>}, {transform_indices = @transform_2, window_bounds = array<i64: 1, 128>}, {transform_indices = @transform_3, window_bounds = array<i64: 16, 128>}, {transform_indices = @transform_4, window_bounds = array<i64: 16, 128>}]} {
    %c0_i32 = arith.constant 0 : i32
    %0 = arith.cmpi eq, %arg2, %c0_i32 : i32
    %1 = arith.extui %0 : i1 to i32
    %c0_i32_0 = arith.constant 0 : i32
    %2 = arith.cmpi ne, %1, %c0_i32_0 : i32
    scf.if %2 {
      %cst_10 = arith.constant 0.000000e+00 : f32
      %13 = vector.broadcast %cst_10 : f32 to vector<16x128xf32>
      %c0_11 = arith.constant 0 : index
      %c0_12 = arith.constant 0 : index
      %14 = vector.load %arg8[%c0_11, %c0_12] : memref<16x128xf32, #tpu.memory_space<vmem>>, vector<16x128xf32>
      tpu.vector_store %arg8[%c0_11, %c0_12], %13 {strides = array<i32>} : memref<16x128xf32, #tpu.memory_space<vmem>>, vector<16x128xf32>,
    } else {
    }
    %c0 = arith.constant 0 : index
    %c0_1 = arith.constant 0 : index
    %3 = vector.load %arg3[%c0, %c0_1] : memref<16x256xf32, #tpu.memory_space<vmem>>, vector<16x256xf32>
    %c0_2 = arith.constant 0 : index
    %c0_3 = arith.constant 0 : index
    %4 = vector.load %arg8[%c0_2, %c0_3] : memref<16x128xf32, #tpu.memory_space<vmem>>, vector<16x128xf32>
    %5 = arith.truncf %3 : vector<16x256xf32> to vector<16x256xbf16>
    %c0_4 = arith.constant 0 : index
    %c0_5 = arith.constant 0 : index
    %6 = vector.load %arg4[%c0_4, %c0_5] : memref<256x128xbf16, #tpu.memory_space<vmem>>, vector<256x128xbf16>
    %cst = arith.constant dense<0.000000e+00> : vector<16x128xf32>
    %7 = tpu.matmul %5, %6, %cst {dimension_numbers = #tpu.dot_dimension_numbers<[1], [0], [0], [1], [0, 0, 1, 1], [], []>} : vector<16x256xbf16>, vector<256x128xbf16>, vector<16x128xf32> -> vector<16x128xf32>
    %8 = arith.addf %4, %7 : vector<16x128xf32>
    %c0_6 = arith.constant 0 : index
    %c0_7 = arith.constant 0 : index
    %9 = vector.load %arg8[%c0_6, %c0_7] : memref<16x128xf32, #tpu.memory_space<vmem>>, vector<16x128xf32>
    tpu.vector_store %arg8[%c0_6, %c0_7], %8 {strides = array<i32>} : memref<16x128xf32, #tpu.memory_space<vmem>>, vector<16x128xf32>,
    %c0_i32_8 = arith.constant 0 : i32
    %10 = arith.cmpi eq, %arg2, %c0_i32_8 : i32
    %11 = arith.extui %10 : i1 to i32
    %c0_i32_9 = arith.constant 0 : i32
    %12 = arith.cmpi ne, %11, %c0_i32_9 : i32
    scf.if %12 {
      %c0_10 = arith.constant 0 : index
      %c0_11 = arith.constant 0 : index
      %13 = vector.load %arg8[%c0_10, %c0_11] : memref<16x128xf32, #tpu.memory_space<vmem>>, vector<16x128xf32>
      %c0_12 = arith.constant 0 : index
      %c0_13 = arith.constant 0 : index
      %14 = vector.load %arg5[%c0_12, %c0_13] : memref<1x128xf32, #tpu.memory_space<vmem>>, vector<1x128xf32>
      %15 = vector.broadcast %14 : vector<1x128xf32> to vector<16x128xf32>
      %16 = arith.addf %13, %15 : vector<16x128xf32>
      %c0_14 = arith.constant 0 : index
      %c0_15 = arith.constant 0 : index
      %17 = vector.load %arg6[%c0_14, %c0_15] : memref<16x128xf32, #tpu.memory_space<vmem>>, vector<16x128xf32>
      %18 = arith.addf %16, %17 : vector<16x128xf32>
      %c0_16 = arith.constant 0 : index
      %c0_17 = arith.constant 0 : index
      %19 = vector.load %arg7[%c0_16, %c0_17] : memref<16x128xf32, #tpu.memory_space<vmem>>, vector<16x128xf32>
      tpu.vector_store %arg7[%c0_16, %c0_17], %18 {strides = array<i32>} : memref<16x128xf32, #tpu.memory_space<vmem>>, vector<16x128xf32>,
    } else {
    }
    return
  }
  func.func @transform_0(%arg0: i32, %arg1: i32, %arg2: i32) -> (i32, i32) {
    %c0_i32 = arith.constant 0 : i32
    return %arg0, %arg2 : i32, i32
  }
  func.func @transform_1(%arg0: i32, %arg1: i32, %arg2: i32) -> (i32, i32) {
    %c0_i32 = arith.constant 0 : i32
    return %arg2, %arg1 : i32, i32
  }
  func.func @transform_2(%arg0: i32, %arg1: i32, %arg2: i32) -> (i32, i32) {
    %c0_i32 = arith.constant 0 : i32
    %c0_i32_0 = arith.constant 0 : i32
    return %c0_i32, %arg1 : i32, i32
  }
  func.func @transform_3(%arg0: i32, %arg1: i32, %arg2: i32) -> (i32, i32) {
    %c0_i32 = arith.constant 0 : i32
    return %arg0, %arg1 : i32, i32
  }
  func.func @transform_4(%arg0: i32, %arg1: i32, %arg2: i32) -> (i32, i32) {
    %c0_i32 = arith.constant 0 : i32
    return %arg0, %arg1 : i32, i32
  }
}

module attributes {stable_mosaic.version = 11 : i64} {
  func.func @_attention_kernel(%arg0: i32, %arg1: memref<1x8x768xf32, #tpu.memory_space<vmem>>, %arg2: memref<1x8x256xf32, #tpu.memory_space<vmem>>) attributes {dimension_semantics = [#tpu.dimension_semantics<parallel>], iteration_bounds = array<i64: 2>, scalar_prefetch = 0 : i64, scratch_operands = 0 : i64, tpu.core_type = #tpu.core_type<tc>, window_params = [{transform_indices = @transform_0, window_bounds = array<i64: 1, 8, 768>}, {transform_indices = @transform_1, window_bounds = array<i64: 1, 8, 256>}]} {
    %0 = tpu.iota {dimensions = array<i32: 1>} : vector<8x8xi32>
    %c5_i32 = arith.constant 5 : i32
    %1 = vector.broadcast %c5_i32 : i32 to vector<8x8xi32>
    %2 = arith.cmpi slt, %0, %1 : vector<8x8xi32>
    %c0 = arith.constant 0 : index
    %c0_0 = arith.constant 0 : index
    %c0_1 = arith.constant 0 : index
    %3 = vector.load %arg1[%c0, %c0_0, %c0_1] : memref<1x8x768xf32, #tpu.memory_space<vmem>>, vector<1x8x128xf32>
    %4 = vector.shape_cast %3 : vector<1x8x128xf32> to vector<8x128xf32>
    %5 = arith.truncf %4 : vector<8x128xf32> to vector<8x128xbf16>
    %c0_2 = arith.constant 0 : index
    %c0_3 = arith.constant 0 : index
    %c256 = arith.constant 256 : index
    %6 = vector.load %arg1[%c0_2, %c0_3, %c256] : memref<1x8x768xf32, #tpu.memory_space<vmem>>, vector<1x8x128xf32>
    %7 = vector.shape_cast %6 : vector<1x8x128xf32> to vector<8x128xf32>
    %8 = arith.truncf %7 : vector<8x128xf32> to vector<8x128xbf16>
    %c0_4 = arith.constant 0 : index
    %c0_5 = arith.constant 0 : index
    %c512 = arith.constant 512 : index
    %9 = vector.load %arg1[%c0_4, %c0_5, %c512] : memref<1x8x768xf32, #tpu.memory_space<vmem>>, vector<1x8x128xf32>
    %10 = vector.shape_cast %9 : vector<1x8x128xf32> to vector<8x128xf32>
    %11 = arith.truncf %10 : vector<8x128xf32> to vector<8x128xbf16>
    %cst = arith.constant dense<0.000000e+00> : vector<8x8xf32>
    %12 = tpu.matmul %5, %8, %cst {dimension_numbers = #tpu.dot_dimension_numbers<[1], [1], [0], [0], [0, 0, 1, 0], [], []>} : vector<8x128xbf16>, vector<8x128xbf16>, vector<8x8xf32> -> vector<8x8xf32>
    %cst_6 = arith.constant -1.000000e+30 : f32
    %13 = vector.broadcast %cst_6 : f32 to vector<8x8xf32>
    %14 = arith.select %2, %12, %13 : vector<8x8xi1>, vector<8x8xf32>
    %cst_7 = arith.constant dense<0xFF800000> : vector<8xf32>
    %15 = vector.multi_reduction <maximumf>, %14, %cst_7 [1] : vector<8x8xf32> to vector<8xf32>
    %16 = vector.shape_cast %15 : vector<8xf32> to vector<8x1xf32>
    %17 = vector.broadcast %16 : vector<8x1xf32> to vector<8x8xf32>
    %18 = arith.subf %14, %17 : vector<8x8xf32>
    %19 = math.exp %18 : vector<8x8xf32>
    %cst_8 = arith.constant dense<0.000000e+00> : vector<8xf32>
    %20 = vector.multi_reduction <add>, %19, %cst_8 [1] : vector<8x8xf32> to vector<8xf32>
    %21 = vector.shape_cast %20 : vector<8xf32> to vector<8x1xf32>
    %22 = tpu.reciprocal %21 {approx = true} : vector<8x1xf32> -> vector<8x1xf32>
    %23 = vector.broadcast %22 : vector<8x1xf32> to vector<8x8xf32>
    %24 = arith.mulf %19, %23 : vector<8x8xf32>
    %25 = arith.truncf %24 : vector<8x8xf32> to vector<8x8xbf16>
    %cst_9 = arith.constant dense<0.000000e+00> : vector<8x128xf32>
    %26 = tpu.matmul %25, %11, %cst_9 {dimension_numbers = #tpu.dot_dimension_numbers<[1], [0], [0], [1], [0, 0, 1, 1], [], []>} : vector<8x8xbf16>, vector<8x128xbf16>, vector<8x128xf32> -> vector<8x128xf32>
    %c0_10 = arith.constant 0 : index
    %c0_11 = arith.constant 0 : index
    %c0_12 = arith.constant 0 : index
    %27 = vector.load %arg2[%c0_10, %c0_11, %c0_12] : memref<1x8x256xf32, #tpu.memory_space<vmem>>, vector<1x8x128xf32>
    %28 = vector.shape_cast %27 : vector<1x8x128xf32> to vector<8x128xf32>
    %29 = vector.shape_cast %26 : vector<8x128xf32> to vector<1x8x128xf32>
    tpu.vector_store %arg2[%c0_10, %c0_11, %c0_12], %29 {strides = array<i32>} : memref<1x8x256xf32, #tpu.memory_space<vmem>>, vector<1x8x128xf32>,
    %c0_13 = arith.constant 0 : index
    %c0_14 = arith.constant 0 : index
    %c128 = arith.constant 128 : index
    %30 = vector.load %arg1[%c0_13, %c0_14, %c128] : memref<1x8x768xf32, #tpu.memory_space<vmem>>, vector<1x8x128xf32>
    %31 = vector.shape_cast %30 : vector<1x8x128xf32> to vector<8x128xf32>
    %32 = arith.truncf %31 : vector<8x128xf32> to vector<8x128xbf16>
    %c0_15 = arith.constant 0 : index
    %c0_16 = arith.constant 0 : index
    %c384 = arith.constant 384 : index
    %33 = vector.load %arg1[%c0_15, %c0_16, %c384] : memref<1x8x768xf32, #tpu.memory_space<vmem>>, vector<1x8x128xf32>
    %34 = vector.shape_cast %33 : vector<1x8x128xf32> to vector<8x128xf32>
    %35 = arith.truncf %34 : vector<8x128xf32> to vector<8x128xbf16>
    %c0_17 = arith.constant 0 : index
    %c0_18 = arith.constant 0 : index
    %c640 = arith.constant 640 : index
    %36 = vector.load %arg1[%c0_17, %c0_18, %c640] : memref<1x8x768xf32, #tpu.memory_space<vmem>>, vector<1x8x128xf32>
    %37 = vector.shape_cast %36 : vector<1x8x128xf32> to vector<8x128xf32>
    %38 = arith.truncf %37 : vector<8x128xf32> to vector<8x128xbf16>
    %cst_19 = arith.constant dense<0.000000e+00> : vector<8x8xf32>
    %39 = tpu.matmul %32, %35, %cst_19 {dimension_numbers = #tpu.dot_dimension_numbers<[1], [1], [0], [0], [0, 0, 1, 0], [], []>} : vector<8x128xbf16>, vector<8x128xbf16>, vector<8x8xf32> -> vector<8x8xf32>
    %cst_20 = arith.constant -1.000000e+30 : f32
    %40 = vector.broadcast %cst_20 : f32 to vector<8x8xf32>
    %41 = arith.select %2, %39, %40 : vector<8x8xi1>, vector<8x8xf32>
    %cst_21 = arith.constant dense<0xFF800000> : vector<8xf32>
    %42 = vector.multi_reduction <maximumf>, %41, %cst_21 [1] : vector<8x8xf32> to vector<8xf32>
    %43 = vector.shape_cast %42 : vector<8xf32> to vector<8x1xf32>
    %44 = vector.broadcast %43 : vector<8x1xf32> to vector<8x8xf32>
    %45 = arith.subf %41, %44 : vector<8x8xf32>
    %46 = math.exp %45 : vector<8x8xf32>
    %cst_22 = arith.constant dense<0.000000e+00> : vector<8xf32>
    %47 = vector.multi_reduction <add>, %46, %cst_22 [1] : vector<8x8xf32> to vector<8xf32>
    %48 = vector.shape_cast %47 : vector<8xf32> to vector<8x1xf32>
    %49 = tpu.reciprocal %48 {approx = true} : vector<8x1xf32> -> vector<8x1xf32>
    %50 = vector.broadcast %49 : vector<8x1xf32> to vector<8x8xf32>
    %51 = arith.mulf %46, %50 : vector<8x8xf32>
    %52 = arith.truncf %51 : vector<8x8xf32> to vector<8x8xbf16>
    %cst_23 = arith.constant dense<0.000000e+00> : vector<8x128xf32>
    %53 = tpu.matmul %52, %38, %cst_23 {dimension_numbers = #tpu.dot_dimension_numbers<[1], [0], [0], [1], [0, 0, 1, 1], [], []>} : vector<8x8xbf16>, vector<8x128xbf16>, vector<8x128xf32> -> vector<8x128xf32>
    %c0_24 = arith.constant 0 : index
    %c0_25 = arith.constant 0 : index
    %c128_26 = arith.constant 128 : index
    %54 = vector.load %arg2[%c0_24, %c0_25, %c128_26] : memref<1x8x256xf32, #tpu.memory_space<vmem>>, vector<1x8x128xf32>
    %55 = vector.shape_cast %54 : vector<1x8x128xf32> to vector<8x128xf32>
    %56 = vector.shape_cast %53 : vector<8x128xf32> to vector<1x8x128xf32>
    tpu.vector_store %arg2[%c0_24, %c0_25, %c128_26], %56 {strides = array<i32>} : memref<1x8x256xf32, #tpu.memory_space<vmem>>, vector<1x8x128xf32>,
    return
  }
  func.func @transform_0(%arg0: i32) -> (i32, i32, i32) {
    %c0_i32 = arith.constant 0 : i32
    %c0_i32_0 = arith.constant 0 : i32
    %c0_i32_1 = arith.constant 0 : i32
    return %arg0, %c0_i32, %c0_i32_0 : i32, i32, i32
  }
  func.func @transform_1(%arg0: i32) -> (i32, i32, i32) {
    %c0_i32 = arith.constant 0 : i32
    %c0_i32_0 = arith.constant 0 : i32
    %c0_i32_1 = arith.constant 0 : i32
    return %arg0, %c0_i32, %c0_i32_0 : i32, i32, i32
  }
}

module attributes {stable_mosaic.version = 11 : i64} {
  func.func @kernel(%arg0: i32, %arg1: i32, %arg2: i32, %arg3: memref<16x128xf32, #tpu.memory_space<vmem>>, %arg4: memref<128x128xbf16, #tpu.memory_space<vmem>>, %arg5: memref<1x128xf32, #tpu.memory_space<vmem>>, %arg6: memref<16x128xf32, #tpu.memory_space<vmem>>, %arg7: memref<16x128xf32, #tpu.memory_space<vmem>>, %arg8: memref<16x128xf32, #tpu.memory_space<vmem>>) attributes {dimension_semantics = [#tpu.dimension_semantics<parallel>, #tpu.dimension_semantics<parallel>, #tpu.dimension_semantics<arbitrary>], iteration_bounds = array<i64: 1, 1, 1>, scalar_prefetch = 0 : i64, scratch_operands = 1 : i64, tpu.core_type = #tpu.core_type<tc>, window_params = [{transform_indices = @transform_0, window_bounds = array<i64: 16, 128>}, {transform_indices = @transform_1, window_bounds = array<i64: 128, 128>}, {transform_indices = @transform_2, window_bounds = array<i64: 1, 128>}, {transform_indices = @transform_3, window_bounds = array<i64: 16, 128>}, {transform_indices = @transform_4, window_bounds = array<i64: 16, 128>}]} {
    %c0_i32 = arith.constant 0 : i32
    %0 = arith.cmpi eq, %arg2, %c0_i32 : i32
    %1 = arith.extui %0 : i1 to i32
    %c0_i32_0 = arith.constant 0 : i32
    %2 = arith.cmpi ne, %1, %c0_i32_0 : i32
    scf.if %2 {
      %cst_10 = arith.constant 0.000000e+00 : f32
      %13 = vector.broadcast %cst_10 : f32 to vector<16x128xf32>
      %c0_11 = arith.constant 0 : index
      %c0_12 = arith.constant 0 : index
      %14 = vector.load %arg8[%c0_11, %c0_12] : memref<16x128xf32, #tpu.memory_space<vmem>>, vector<16x128xf32>
      tpu.vector_store %arg8[%c0_11, %c0_12], %13 {strides = array<i32>} : memref<16x128xf32, #tpu.memory_space<vmem>>, vector<16x128xf32>,
    } else {
    }
    %c0 = arith.constant 0 : index
    %c0_1 = arith.constant 0 : index
    %3 = vector.load %arg3[%c0, %c0_1] : memref<16x128xf32, #tpu.memory_space<vmem>>, vector<16x128xf32>
    %c0_2 = arith.constant 0 : index
    %c0_3 = arith.constant 0 : index
    %4 = vector.load %arg8[%c0_2, %c0_3] : memref<16x128xf32, #tpu.memory_space<vmem>>, vector<16x128xf32>
    %5 = arith.truncf %3 : vector<16x128xf32> to vector<16x128xbf16>
    %c0_4 = arith.constant 0 : index
    %c0_5 = arith.constant 0 : index
    %6 = vector.load %arg4[%c0_4, %c0_5] : memref<128x128xbf16, #tpu.memory_space<vmem>>, vector<128x128xbf16>
    %cst = arith.constant dense<0.000000e+00> : vector<16x128xf32>
    %7 = tpu.matmul %5, %6, %cst {dimension_numbers = #tpu.dot_dimension_numbers<[1], [0], [0], [1], [0, 0, 1, 1], [], []>} : vector<16x128xbf16>, vector<128x128xbf16>, vector<16x128xf32> -> vector<16x128xf32>
    %8 = arith.addf %4, %7 : vector<16x128xf32>
    %c0_6 = arith.constant 0 : index
    %c0_7 = arith.constant 0 : index
    %9 = vector.load %arg8[%c0_6, %c0_7] : memref<16x128xf32, #tpu.memory_space<vmem>>, vector<16x128xf32>
    tpu.vector_store %arg8[%c0_6, %c0_7], %8 {strides = array<i32>} : memref<16x128xf32, #tpu.memory_space<vmem>>, vector<16x128xf32>,
    %c0_i32_8 = arith.constant 0 : i32
    %10 = arith.cmpi eq, %arg2, %c0_i32_8 : i32
    %11 = arith.extui %10 : i1 to i32
    %c0_i32_9 = arith.constant 0 : i32
    %12 = arith.cmpi ne, %11, %c0_i32_9 : i32
    scf.if %12 {
      %c0_10 = arith.constant 0 : index
      %c0_11 = arith.constant 0 : index
      %13 = vector.load %arg8[%c0_10, %c0_11] : memref<16x128xf32, #tpu.memory_space<vmem>>, vector<16x128xf32>
      %c0_12 = arith.constant 0 : index
      %c0_13 = arith.constant 0 : index
      %14 = vector.load %arg5[%c0_12, %c0_13] : memref<1x128xf32, #tpu.memory_space<vmem>>, vector<1x128xf32>
      %15 = vector.broadcast %14 : vector<1x128xf32> to vector<16x128xf32>
      %16 = arith.addf %13, %15 : vector<16x128xf32>
      %c0_14 = arith.constant 0 : index
      %c0_15 = arith.constant 0 : index
      %17 = vector.load %arg6[%c0_14, %c0_15] : memref<16x128xf32, #tpu.memory_space<vmem>>, vector<16x128xf32>
      %18 = arith.addf %16, %17 : vector<16x128xf32>
      %c0_16 = arith.constant 0 : index
      %c0_17 = arith.constant 0 : index
      %19 = vector.load %arg7[%c0_16, %c0_17] : memref<16x128xf32, #tpu.memory_space<vmem>>, vector<16x128xf32>
      tpu.vector_store %arg7[%c0_16, %c0_17], %18 {strides = array<i32>} : memref<16x128xf32, #tpu.memory_space<vmem>>, vector<16x128xf32>,
    } else {
    }
    return
  }
  func.func @transform_0(%arg0: i32, %arg1: i32, %arg2: i32) -> (i32, i32) {
    %c0_i32 = arith.constant 0 : i32
    return %arg0, %arg2 : i32, i32
  }
  func.func @transform_1(%arg0: i32, %arg1: i32, %arg2: i32) -> (i32, i32) {
    %c0_i32 = arith.constant 0 : i32
    return %arg2, %arg1 : i32, i32
  }
  func.func @transform_2(%arg0: i32, %arg1: i32, %arg2: i32) -> (i32, i32) {
    %c0_i32 = arith.constant 0 : i32
    %c0_i32_0 = arith.constant 0 : i32
    return %c0_i32, %arg1 : i32, i32
  }
  func.func @transform_3(%arg0: i32, %arg1: i32, %arg2: i32) -> (i32, i32) {
    %c0_i32 = arith.constant 0 : i32
    return %arg0, %arg1 : i32, i32
  }
  func.func @transform_4(%arg0: i32, %arg1: i32, %arg2: i32) -> (i32, i32) {
    %c0_i32 = arith.constant 0 : i32
    return %arg0, %arg1 : i32, i32
  }
}

module attributes {stable_mosaic.version = 11 : i64} {
  func.func @kernel(%arg0: i32, %arg1: i32, %arg2: i32, %arg3: memref<16x128xf32, #tpu.memory_space<vmem>>, %arg4: memref<128x128xbf16, #tpu.memory_space<vmem>>, %arg5: memref<1x128xf32, #tpu.memory_space<vmem>>, %arg6: memref<1x128xf32, #tpu.memory_space<vmem>>, %arg7: memref<1x128xf32, #tpu.memory_space<vmem>>, %arg8: memref<16x128xf32, #tpu.memory_space<vmem>>, %arg9: memref<16x128xf32, #tpu.memory_space<vmem>>) attributes {dimension_semantics = [#tpu.dimension_semantics<parallel>, #tpu.dimension_semantics<parallel>, #tpu.dimension_semantics<arbitrary>], iteration_bounds = array<i64: 1, 1, 1>, scalar_prefetch = 0 : i64, scratch_operands = 1 : i64, tpu.core_type = #tpu.core_type<tc>, window_params = [{transform_indices = @transform_0, window_bounds = array<i64: 16, 128>}, {transform_indices = @transform_1, window_bounds = array<i64: 128, 128>}, {transform_indices = @transform_2, window_bounds = array<i64: 1, 128>}, {transform_indices = @transform_3, window_bounds = array<i64: 1, 128>}, {transform_indices = @transform_4, window_bounds = array<i64: 1, 128>}, {transform_indices = @transform_5, window_bounds = array<i64: 16, 128>}]} {
    %c0_i32 = arith.constant 0 : i32
    %0 = arith.cmpi eq, %arg2, %c0_i32 : i32
    %1 = arith.extui %0 : i1 to i32
    %c0_i32_0 = arith.constant 0 : i32
    %2 = arith.cmpi ne, %1, %c0_i32_0 : i32
    scf.if %2 {
      %cst_21 = arith.constant 0.000000e+00 : f32
      %42 = vector.broadcast %cst_21 : f32 to vector<16x128xf32>
      %c0_22 = arith.constant 0 : index
      %c0_23 = arith.constant 0 : index
      %43 = vector.load %arg9[%c0_22, %c0_23] : memref<16x128xf32, #tpu.memory_space<vmem>>, vector<16x128xf32>
      tpu.vector_store %arg9[%c0_22, %c0_23], %42 {strides = array<i32>} : memref<16x128xf32, #tpu.memory_space<vmem>>, vector<16x128xf32>,
    } else {
    }
    %c0 = arith.constant 0 : index
    %c0_1 = arith.constant 0 : index
    %3 = vector.load %arg3[%c0, %c0_1] : memref<16x128xf32, #tpu.memory_space<vmem>>, vector<16x128xf32>
    %4 = tpu.iota {dimensions = array<i32: 1>} : vector<16x128xi32>
    %c32_i32 = arith.constant 32 : i32
    %5 = vector.broadcast %c32_i32 : i32 to vector<16x128xi32>
    %6 = arith.cmpi slt, %4, %5 : vector<16x128xi32>
    %cst = arith.constant 0.000000e+00 : f32
    %7 = vector.broadcast %cst : f32 to vector<16x128xf32>
    %8 = arith.select %6, %3, %7 : vector<16x128xi1>, vector<16x128xf32>
    %cst_2 = arith.constant dense<0.000000e+00> : vector<16xf32>
    %9 = vector.multi_reduction <add>, %8, %cst_2 [1] : vector<16x128xf32> to vector<16xf32>
    %10 = vector.shape_cast %9 : vector<16xf32> to vector<16x1xf32>
    %cst_3 = arith.constant 3.125000e-02 : f32
    %11 = vector.broadcast %cst_3 : f32 to vector<16x1xf32>
    %12 = arith.mulf %10, %11 : vector<16x1xf32>
    %13 = vector.broadcast %12 : vector<16x1xf32> to vector<16x128xf32>
    %14 = arith.subf %8, %13 : vector<16x128xf32>
    %cst_4 = arith.constant 0.000000e+00 : f32
    %15 = vector.broadcast %cst_4 : f32 to vector<16x128xf32>
    %16 = arith.select %6, %14, %15 : vector<16x128xi1>, vector<16x128xf32>
    %17 = arith.mulf %16, %16 : vector<16x128xf32>
    %cst_5 = arith.constant dense<0.000000e+00> : vector<16xf32>
    %18 = vector.multi_reduction <add>, %17, %cst_5 [1] : vector<16x128xf32> to vector<16xf32>
    %19 = vector.shape_cast %18 : vector<16xf32> to vector<16x1xf32>
    %cst_6 = arith.constant 3.125000e-02 : f32
    %20 = vector.broadcast %cst_6 : f32 to vector<16x1xf32>
    %21 = arith.mulf %19, %20 : vector<16x1xf32>
    %cst_7 = arith.constant 9.99999997E-7 : f32
    %22 = vector.broadcast %cst_7 : f32 to vector<16x1xf32>
    %23 = arith.addf %21, %22 : vector<16x1xf32>
    %24 = math.rsqrt %23 : vector<16x1xf32>
    %25 = vector.broadcast %24 : vector<16x1xf32> to vector<16x128xf32>
    %26 = arith.mulf %16, %25 : vector<16x128xf32>
    %c0_8 = arith.constant 0 : index
    %c0_9 = arith.constant 0 : index
    %27 = vector.load %arg6[%c0_8, %c0_9] : memref<1x128xf32, #tpu.memory_space<vmem>>, vector<1x128xf32>
    %28 = vector.broadcast %27 : vector<1x128xf32> to vector<16x128xf32>
    %29 = arith.mulf %26, %28 : vector<16x128xf32>
    %c0_10 = arith.constant 0 : index
    %c0_11 = arith.constant 0 : index
    %30 = vector.load %arg7[%c0_10, %c0_11] : memref<1x128xf32, #tpu.memory_space<vmem>>, vector<1x128xf32>
    %31 = vector.broadcast %30 : vector<1x128xf32> to vector<16x128xf32>
    %32 = arith.addf %29, %31 : vector<16x128xf32>
    %c0_12 = arith.constant 0 : index
    %c0_13 = arith.constant 0 : index
    %33 = vector.load %arg9[%c0_12, %c0_13] : memref<16x128xf32, #tpu.memory_space<vmem>>, vector<16x128xf32>
    %34 = arith.truncf %32 : vector<16x128xf32> to vector<16x128xbf16>
    %c0_14 = arith.constant 0 : index
    %c0_15 = arith.constant 0 : index
    %35 = vector.load %arg4[%c0_14, %c0_15] : memref<128x128xbf16, #tpu.memory_space<vmem>>, vector<128x128xbf16>
    %cst_16 = arith.constant dense<0.000000e+00> : vector<16x128xf32>
    %36 = tpu.matmul %34, %35, %cst_16 {dimension_numbers = #tpu.dot_dimension_numbers<[1], [0], [0], [1], [0, 0, 1, 1], [], []>} : vector<16x128xbf16>, vector<128x128xbf16>, vector<16x128xf32> -> vector<16x128xf32>
    %37 = arith.addf %33, %36 : vector<16x128xf32>
    %c0_17 = arith.constant 0 : index
    %c0_18 = arith.constant 0 : index
    %38 = vector.load %arg9[%c0_17, %c0_18] : memref<16x128xf32, #tpu.memory_space<vmem>>, vector<16x128xf32>
    tpu.vector_store %arg9[%c0_17, %c0_18], %37 {strides = array<i32>} : memref<16x128xf32, #tpu.memory_space<vmem>>, vector<16x128xf32>,
    %c0_i32_19 = arith.constant 0 : i32
    %39 = arith.cmpi eq, %arg2, %c0_i32_19 : i32
    %40 = arith.extui %39 : i1 to i32
    %c0_i32_20 = arith.constant 0 : i32
    %41 = arith.cmpi ne, %40, %c0_i32_20 : i32
    scf.if %41 {
      %c0_21 = arith.constant 0 : index
      %c0_22 = arith.constant 0 : index
      %42 = vector.load %arg9[%c0_21, %c0_22] : memref<16x128xf32, #tpu.memory_space<vmem>>, vector<16x128xf32>
      %c0_23 = arith.constant 0 : index
      %c0_24 = arith.constant 0 : index
      %43 = vector.load %arg5[%c0_23, %c0_24] : memref<1x128xf32, #tpu.memory_space<vmem>>, vector<1x128xf32>
      %44 = vector.broadcast %43 : vector<1x128xf32> to vector<16x128xf32>
      %45 = arith.addf %42, %44 : vector<16x128xf32>
      %46 = arith.mulf %45, %45 : vector<16x128xf32>
      %47 = arith.mulf %45, %46 : vector<16x128xf32>
      %cst_25 = arith.constant 4.471500e-02 : f32
      %48 = vector.broadcast %cst_25 : f32 to vector<16x128xf32>
      %49 = arith.mulf %48, %47 : vector<16x128xf32>
      %50 = arith.addf %45, %49 : vector<16x128xf32>
      %cst_26 = arith.constant 0.797884583 : f32
      %51 = vector.broadcast %cst_26 : f32 to vector<16x128xf32>
      %52 = arith.mulf %51, %50 : vector<16x128xf32>
      %53 = math.tanh %52 : vector<16x128xf32>
      %cst_27 = arith.constant 1.000000e+00 : f32
      %54 = vector.broadcast %cst_27 : f32 to vector<16x128xf32>
      %55 = arith.addf %54, %53 : vector<16x128xf32>
      %cst_28 = arith.constant 5.000000e-01 : f32
      %56 = vector.broadcast %cst_28 : f32 to vector<16x128xf32>
      %57 = arith.mulf %56, %55 : vector<16x128xf32>
      %58 = arith.mulf %45, %57 : vector<16x128xf32>
      %c0_29 = arith.constant 0 : index
      %c0_30 = arith.constant 0 : index
      %59 = vector.load %arg8[%c0_29, %c0_30] : memref<16x128xf32, #tpu.memory_space<vmem>>, vector<16x128xf32>
      tpu.vector_store %arg8[%c0_29, %c0_30], %58 {strides = array<i32>} : memref<16x128xf32, #tpu.memory_space<vmem>>, vector<16x128xf32>,
    } else {
    }
    return
  }
  func.func @transform_0(%arg0: i32, %arg1: i32, %arg2: i32) -> (i32, i32) {
    %c0_i32 = arith.constant 0 : i32
    return %arg0, %arg2 : i32, i32
  }
  func.func @transform_1(%arg0: i32, %arg1: i32, %arg2: i32) -> (i32, i32) {
    %c0_i32 = arith.constant 0 : i32
    return %arg2, %arg1 : i32, i32
  }
  func.func @transform_2(%arg0: i32, %arg1: i32, %arg2: i32) -> (i32, i32) {
    %c0_i32 = arith.constant 0 : i32
    %c0_i32_0 = arith.constant 0 : i32
    return %c0_i32, %arg1 : i32, i32
  }
  func.func @transform_3(%arg0: i32, %arg1: i32, %arg2: i32) -> (i32, i32) {
    %c0_i32 = arith.constant 0 : i32
    %c0_i32_0 = arith.constant 0 : i32
    return %c0_i32, %arg2 : i32, i32
  }
  func.func @transform_4(%arg0: i32, %arg1: i32, %arg2: i32) -> (i32, i32) {
    %c0_i32 = arith.constant 0 : i32
    %c0_i32_0 = arith.constant 0 : i32
    return %c0_i32, %arg2 : i32, i32
  }
  func.func @transform_5(%arg0: i32, %arg1: i32, %arg2: i32) -> (i32, i32) {
    %c0_i32 = arith.constant 0 : i32
    return %arg0, %arg1 : i32, i32
  }
}

module attributes {stable_mosaic.version = 11 : i64} {
  func.func @kernel(%arg0: i32, %arg1: i32, %arg2: i32, %arg3: memref<16x128xf32, #tpu.memory_space<vmem>>, %arg4: memref<128x128xbf16, #tpu.memory_space<vmem>>, %arg5: memref<1x128xf32, #tpu.memory_space<vmem>>, %arg6: memref<1x128xf32, #tpu.memory_space<vmem>>, %arg7: memref<1x128xf32, #tpu.memory_space<vmem>>, %arg8: memref<16x128xf32, #tpu.memory_space<vmem>>, %arg9: memref<16x128xf32, #tpu.memory_space<vmem>>) attributes {dimension_semantics = [#tpu.dimension_semantics<parallel>, #tpu.dimension_semantics<parallel>, #tpu.dimension_semantics<arbitrary>], iteration_bounds = array<i64: 1, 1, 1>, scalar_prefetch = 0 : i64, scratch_operands = 1 : i64, tpu.core_type = #tpu.core_type<tc>, window_params = [{transform_indices = @transform_0, window_bounds = array<i64: 16, 128>}, {transform_indices = @transform_1, window_bounds = array<i64: 128, 128>}, {transform_indices = @transform_2, window_bounds = array<i64: 1, 128>}, {transform_indices = @transform_3, window_bounds = array<i64: 1, 128>}, {transform_indices = @transform_4, window_bounds = array<i64: 1, 128>}, {transform_indices = @transform_5, window_bounds = array<i64: 16, 128>}]} {
    %c0_i32 = arith.constant 0 : i32
    %0 = arith.cmpi eq, %arg2, %c0_i32 : i32
    %1 = arith.extui %0 : i1 to i32
    %c0_i32_0 = arith.constant 0 : i32
    %2 = arith.cmpi ne, %1, %c0_i32_0 : i32
    scf.if %2 {
      %cst_21 = arith.constant 0.000000e+00 : f32
      %42 = vector.broadcast %cst_21 : f32 to vector<16x128xf32>
      %c0_22 = arith.constant 0 : index
      %c0_23 = arith.constant 0 : index
      %43 = vector.load %arg9[%c0_22, %c0_23] : memref<16x128xf32, #tpu.memory_space<vmem>>, vector<16x128xf32>
      tpu.vector_store %arg9[%c0_22, %c0_23], %42 {strides = array<i32>} : memref<16x128xf32, #tpu.memory_space<vmem>>, vector<16x128xf32>,
    } else {
    }
    %c0 = arith.constant 0 : index
    %c0_1 = arith.constant 0 : index
    %3 = vector.load %arg3[%c0, %c0_1] : memref<16x128xf32, #tpu.memory_space<vmem>>, vector<16x128xf32>
    %4 = tpu.iota {dimensions = array<i32: 1>} : vector<16x128xi32>
    %c32_i32 = arith.constant 32 : i32
    %5 = vector.broadcast %c32_i32 : i32 to vector<16x128xi32>
    %6 = arith.cmpi slt, %4, %5 : vector<16x128xi32>
    %cst = arith.constant 0.000000e+00 : f32
    %7 = vector.broadcast %cst : f32 to vector<16x128xf32>
    %8 = arith.select %6, %3, %7 : vector<16x128xi1>, vector<16x128xf32>
    %cst_2 = arith.constant dense<0.000000e+00> : vector<16xf32>
    %9 = vector.multi_reduction <add>, %8, %cst_2 [1] : vector<16x128xf32> to vector<16xf32>
    %10 = vector.shape_cast %9 : vector<16xf32> to vector<16x1xf32>
    %cst_3 = arith.constant 3.125000e-02 : f32
    %11 = vector.broadcast %cst_3 : f32 to vector<16x1xf32>
    %12 = arith.mulf %10, %11 : vector<16x1xf32>
    %13 = vector.broadcast %12 : vector<16x1xf32> to vector<16x128xf32>
    %14 = arith.subf %8, %13 : vector<16x128xf32>
    %cst_4 = arith.constant 0.000000e+00 : f32
    %15 = vector.broadcast %cst_4 : f32 to vector<16x128xf32>
    %16 = arith.select %6, %14, %15 : vector<16x128xi1>, vector<16x128xf32>
    %17 = arith.mulf %16, %16 : vector<16x128xf32>
    %cst_5 = arith.constant dense<0.000000e+00> : vector<16xf32>
    %18 = vector.multi_reduction <add>, %17, %cst_5 [1] : vector<16x128xf32> to vector<16xf32>
    %19 = vector.shape_cast %18 : vector<16xf32> to vector<16x1xf32>
    %cst_6 = arith.constant 3.125000e-02 : f32
    %20 = vector.broadcast %cst_6 : f32 to vector<16x1xf32>
    %21 = arith.mulf %19, %20 : vector<16x1xf32>
    %cst_7 = arith.constant 9.99999997E-7 : f32
    %22 = vector.broadcast %cst_7 : f32 to vector<16x1xf32>
    %23 = arith.addf %21, %22 : vector<16x1xf32>
    %24 = math.rsqrt %23 : vector<16x1xf32>
    %25 = vector.broadcast %24 : vector<16x1xf32> to vector<16x128xf32>
    %26 = arith.mulf %16, %25 : vector<16x128xf32>
    %c0_8 = arith.constant 0 : index
    %c0_9 = arith.constant 0 : index
    %27 = vector.load %arg6[%c0_8, %c0_9] : memref<1x128xf32, #tpu.memory_space<vmem>>, vector<1x128xf32>
    %28 = vector.broadcast %27 : vector<1x128xf32> to vector<16x128xf32>
    %29 = arith.mulf %26, %28 : vector<16x128xf32>
    %c0_10 = arith.constant 0 : index
    %c0_11 = arith.constant 0 : index
    %30 = vector.load %arg7[%c0_10, %c0_11] : memref<1x128xf32, #tpu.memory_space<vmem>>, vector<1x128xf32>
    %31 = vector.broadcast %30 : vector<1x128xf32> to vector<16x128xf32>
    %32 = arith.addf %29, %31 : vector<16x128xf32>
    %c0_12 = arith.constant 0 : index
    %c0_13 = arith.constant 0 : index
    %33 = vector.load %arg9[%c0_12, %c0_13] : memref<16x128xf32, #tpu.memory_space<vmem>>, vector<16x128xf32>
    %34 = arith.truncf %32 : vector<16x128xf32> to vector<16x128xbf16>
    %c0_14 = arith.constant 0 : index
    %c0_15 = arith.constant 0 : index
    %35 = vector.load %arg4[%c0_14, %c0_15] : memref<128x128xbf16, #tpu.memory_space<vmem>>, vector<128x128xbf16>
    %cst_16 = arith.constant dense<0.000000e+00> : vector<16x128xf32>
    %36 = tpu.matmul %34, %35, %cst_16 {dimension_numbers = #tpu.dot_dimension_numbers<[1], [0], [0], [1], [0, 0, 1, 1], [], []>} : vector<16x128xbf16>, vector<128x128xbf16>, vector<16x128xf32> -> vector<16x128xf32>
    %37 = arith.addf %33, %36 : vector<16x128xf32>
    %c0_17 = arith.constant 0 : index
    %c0_18 = arith.constant 0 : index
    %38 = vector.load %arg9[%c0_17, %c0_18] : memref<16x128xf32, #tpu.memory_space<vmem>>, vector<16x128xf32>
    tpu.vector_store %arg9[%c0_17, %c0_18], %37 {strides = array<i32>} : memref<16x128xf32, #tpu.memory_space<vmem>>, vector<16x128xf32>,
    %c0_i32_19 = arith.constant 0 : i32
    %39 = arith.cmpi eq, %arg2, %c0_i32_19 : i32
    %40 = arith.extui %39 : i1 to i32
    %c0_i32_20 = arith.constant 0 : i32
    %41 = arith.cmpi ne, %40, %c0_i32_20 : i32
    scf.if %41 {
      %c0_21 = arith.constant 0 : index
      %c0_22 = arith.constant 0 : index
      %42 = vector.load %arg9[%c0_21, %c0_22] : memref<16x128xf32, #tpu.memory_space<vmem>>, vector<16x128xf32>
      %c0_23 = arith.constant 0 : index
      %c0_24 = arith.constant 0 : index
      %43 = vector.load %arg5[%c0_23, %c0_24] : memref<1x128xf32, #tpu.memory_space<vmem>>, vector<1x128xf32>
      %44 = vector.broadcast %43 : vector<1x128xf32> to vector<16x128xf32>
      %45 = arith.addf %42, %44 : vector<16x128xf32>
      %c0_25 = arith.constant 0 : index
      %c0_26 = arith.constant 0 : index
      %46 = vector.load %arg8[%c0_25, %c0_26] : memref<16x128xf32, #tpu.memory_space<vmem>>, vector<16x128xf32>
      tpu.vector_store %arg8[%c0_25, %c0_26], %45 {strides = array<i32>} : memref<16x128xf32, #tpu.memory_space<vmem>>, vector<16x128xf32>,
    } else {
    }
    return
  }
  func.func @transform_0(%arg0: i32, %arg1: i32, %arg2: i32) -> (i32, i32) {
    %c0_i32 = arith.constant 0 : i32
    return %arg0, %arg2 : i32, i32
  }
  func.func @transform_1(%arg0: i32, %arg1: i32, %arg2: i32) -> (i32, i32) {
    %c0_i32 = arith.constant 0 : i32
    return %arg2, %arg1 : i32, i32
  }
  func.func @transform_2(%arg0: i32, %arg1: i32, %arg2: i32) -> (i32, i32) {
    %c0_i32 = arith.constant 0 : i32
    %c0_i32_0 = arith.constant 0 : i32
    return %c0_i32, %arg1 : i32, i32
  }
  func.func @transform_3(%arg0: i32, %arg1: i32, %arg2: i32) -> (i32, i32) {
    %c0_i32 = arith.constant 0 : i32
    %c0_i32_0 = arith.constant 0 : i32
    return %c0_i32, %arg2 : i32, i32
  }
  func.func @transform_4(%arg0: i32, %arg1: i32, %arg2: i32) -> (i32, i32) {
    %c0_i32 = arith.constant 0 : i32
    %c0_i32_0 = arith.constant 0 : i32
    return %c0_i32, %arg2 : i32, i32
  }
  func.func @transform_5(%arg0: i32, %arg1: i32, %arg2: i32) -> (i32, i32) {
    %c0_i32 = arith.constant 0 : i32
    return %arg0, %arg1 : i32, i32
  }
}

</mosaic_0001>

<llo_original>
// kernel: forward.7
$region0: #{forward.7}
  #allocation0 [shape = 'u32[]', space=smem, size = 0x4, offset = 0x4, fixed_abs, tag = 'smem constant byte address 0x4 - core index']
  #allocation1 [shape = 'u32[72,128]{1,0:T(1,128)}', space=vmem, size = 0x9000, scoped, tag = 'internal scratch']
  #allocation2 [shape = 'f32[8,128]{1,0:T(8,128)}', space=vmem, size = 0x1000, scoped, tag = 'scratch operand']
  %s0 = inlined_call_operand.vmem [shape: f32[8,256], index: 0, kind: input, shape index: {}]
  %s1 = inlined_call_operand.vmem [shape: bf16[256,128], index: 1, kind: input, shape index: {}]
  %s2 = inlined_call_operand.vmem [shape: f32[1,128], index: 2, kind: input, shape index: {}]
  %s3 = inlined_call_operand.vmem [shape: f32[8,128], index: 3, kind: output, shape index: {}]
  %s4 = sld [smem:[#allocation0]]
  $region30: #{forward.7} parent=0
    _
  %s6 = ssub.s32 1, %s4
  %s7 = scalar_select 0, %s6, %s4
  // Predicated region
  $region2: #{forward.7} parent=0 // pred_check
    _
  $region3: #{forward.7} parent=0 // pred_check_branch
    %9 = sbr.rel (0) target = $region5
  $region4: #{forward.7} parent=0 // pred_region
    _
  $region5: #{forward.7} parent=0 // pred_fallthru
    _
  // Predicated region
  $region6: #{forward.7} parent=0 // pred_check
    _
  $region7: #{forward.7} parent=0 // pred_check_branch
    %11 = sbr.rel (0) target = $region9
  $region8: #{forward.7} parent=0 // pred_region
    _
  $region9: #{forward.7} parent=0 // pred_fallthru
    _
  // Predicated region
  $region10: #{forward.7} parent=0 // pred_check
    _
  $region11: #{forward.7} parent=0 // pred_check_branch
    %13 = sbr.rel (0) target = $region13
  $region12: #{forward.7} parent=0 // pred_region
    _
  $region13: #{forward.7} parent=0 // pred_fallthru
    _
  %p14 = scmp.eq.s32.totalorder 0, 0
  // Predicated region
  $region14: #{forward.7} parent=0 // pred_check
    %p15 = pneg %p14
  $region15: #{forward.7} parent=0 // pred_check_branch
    %17 = sbr.rel (%p15) target = $region17
  $region16: #{forward.7} parent=0 // pred_region
    %18 = vst [vmem:[#allocation2] sm:$0xff] 0.0
  $region17: #{forward.7} parent=0 // pred_fallthru
    _
  %v19 = vld [vmem:[%s0] sm:$0xff]
  %v20 = vld [vmem:[%s0 + $0x8] sm:$0xff]
  %v21 = vld [vmem:[#allocation2] sm:$0xff]
  %v22 = vpack.c.bf16 %v19, %v19
  %v23 = vpack.c.bf16 %v20, %v20
  %v24 = vld [vmem:[%s1] sm:$0xf]
  %v25 = vld [vmem:[%s1 + $0x4] sm:$0xf]
  %v26 = vld [vmem:[%s1 + $0x8] sm:$0xf]
  %v27 = vld [vmem:[%s1 + $0xc] sm:$0xf]
  %v28 = vld [vmem:[%s1 + $0x10] sm:$0xf]
  %v29 = vld [vmem:[%s1 + $0x14] sm:$0xf]
  %v30 = vld [vmem:[%s1 + $0x18] sm:$0xf]
  %v31 = vld [vmem:[%s1 + $0x1c] sm:$0xf]
  %v32 = vld [vmem:[%s1 + $0x20] sm:$0xf]
  %v33 = vld [vmem:[%s1 + $0x24] sm:$0xf]
  %v34 = vld [vmem:[%s1 + $0x28] sm:$0xf]
  %v35 = vld [vmem:[%s1 + $0x2c] sm:$0xf]
  %v36 = vld [vmem:[%s1 + $0x30] sm:$0xf]
  %v37 = vld [vmem:[%s1 + $0x34] sm:$0xf]
  %v38 = vld [vmem:[%s1 + $0x38] sm:$0xf]
  %v39 = vld [vmem:[%s1 + $0x3c] sm:$0xf]
  %v40 = vld [vmem:[%s1 + $0x40] sm:$0xf]
  %v41 = vld [vmem:[%s1 + $0x44] sm:$0xf]
  %v42 = vld [vmem:[%s1 + $0x48] sm:$0xf]
  %v43 = vld [vmem:[%s1 + $0x4c] sm:$0xf]
  %v44 = vld [vmem:[%s1 + $0x50] sm:$0xf]
  %v45 = vld [vmem:[%s1 + $0x54] sm:$0xf]
  %v46 = vld [vmem:[%s1 + $0x58] sm:$0xf]
  %v47 = vld [vmem:[%s1 + $0x5c] sm:$0xf]
  %v48 = vld [vmem:[%s1 + $0x60] sm:$0xf]
  %v49 = vld [vmem:[%s1 + $0x64] sm:$0xf]
  %v50 = vld [vmem:[%s1 + $0x68] sm:$0xf]
  %v51 = vld [vmem:[%s1 + $0x6c] sm:$0xf]
  %v52 = vld [vmem:[%s1 + $0x70] sm:$0xf]
  %v53 = vld [vmem:[%s1 + $0x74] sm:$0xf]
  %v54 = vld [vmem:[%s1 + $0x78] sm:$0xf]
  %v55 = vld [vmem:[%s1 + $0x7c] sm:$0xf]
  %v88 = vunpack.c.l.b16 %v24
  %v89 = vunpack.c.l.b16 %v25
  %v90 = vunpack.c.l.b16 %v26
  %v91 = vunpack.c.l.b16 %v27
  %v92 = vunpack.c.l.b16 %v28
  %v93 = vunpack.c.l.b16 %v29
  %v94 = vunpack.c.l.b16 %v30
  %v95 = vunpack.c.l.b16 %v31
  %v96 = vunpack.c.l.b16 %v32
  %v97 = vunpack.c.l.b16 %v33
  %v98 = vunpack.c.l.b16 %v34
  %v99 = vunpack.c.l.b16 %v35
  %v100 = vunpack.c.l.b16 %v36
  %v101 = vunpack.c.l.b16 %v37
  %v102 = vunpack.c.l.b16 %v38
  %v103 = vunpack.c.l.b16 %v39
  %v104 = vunpack.c.l.b16 %v40
  %v105 = vunpack.c.l.b16 %v41
  %v106 = vunpack.c.l.b16 %v42
  %v107 = vunpack.c.l.b16 %v43
  %v108 = vunpack.c.l.b16 %v44
  %v109 = vunpack.c.l.b16 %v45
  %v110 = vunpack.c.l.b16 %v46
  %v111 = vunpack.c.l.b16 %v47
  %v112 = vunpack.c.l.b16 %v48
  %v113 = vunpack.c.l.b16 %v49
  %v114 = vunpack.c.l.b16 %v50
  %v115 = vunpack.c.l.b16 %v51
  %v116 = vunpack.c.l.b16 %v52
  %v117 = vunpack.c.l.b16 %v53
  %v118 = vunpack.c.l.b16 %v54
  %v119 = vunpack.c.l.b16 %v55
  %v120 = vpack.c.b16 %v89, %v88
  %v121 = vpack.c.b16 %v91, %v90
  %v122 = vpack.c.b16 %v93, %v92
  %v123 = vpack.c.b16 %v95, %v94
  %v124 = vpack.c.b16 %v97, %v96
  %v125 = vpack.c.b16 %v99, %v98
  %v126 = vpack.c.b16 %v101, %v100
  %v127 = vpack.c.b16 %v103, %v102
  %v128 = vpack.c.b16 %v105, %v104
  %v129 = vpack.c.b16 %v107, %v106
  %v130 = vpack.c.b16 %v109, %v108
  %v131 = vpack.c.b16 %v111, %v110
  %v132 = vpack.c.b16 %v113, %v112
  %v133 = vpack.c.b16 %v115, %v114
  %v134 = vpack.c.b16 %v117, %v116
  %v135 = vpack.c.b16 %v119, %v118
  %152 = vmatpush.bf16.msra.mxu0 %v127
  %153 = vmatpush.bf16.msra.mxu0 %v126
  %154 = vmatpush.bf16.msra.mxu0 %v125
  %155 = vmatpush.bf16.msra.mxu0 %v124
  %156 = vmatpush.bf16.msra.mxu0 %v123
  %157 = vmatpush.bf16.msra.mxu0 %v122
  %158 = vmatpush.bf16.msra.mxu0 %v121
  %159 = vmatpush.bf16.msra.mxu0 %v120
  %160 = vmatmul.bf16.gmra.mxu0 %v22
  %v161 = vpop.f32.mrf.mxu0
  %v162 = vadd.f32 0.0, %v161
  %v163 = vpop.f32.mrf.mxu0
  %164 = vdwg.mxu0
  %165 = vmatpush.bf16.msra.mxu0 %v135
  %166 = vmatpush.bf16.msra.mxu0 %v134
  %167 = vmatpush.bf16.msra.mxu0 %v133
  %168 = vmatpush.bf16.msra.mxu0 %v132
  %169 = vmatpush.bf16.msra.mxu0 %v131
  %170 = vmatpush.bf16.msra.mxu0 %v130
  %171 = vmatpush.bf16.msra.mxu0 %v129
  %172 = vmatpush.bf16.msra.mxu0 %v128
  %173 = vmatmul.bf16.gmra.mxu0 %v23
  %v174 = vpop.f32.mrf.mxu0
  %v175 = vadd.f32 %v162, %v174
  %v176 = vpop.f32.mrf.mxu0
  %177 = vdwg.mxu0
  %v178 = vadd.f32 %v21, %v175
  %179 = vst [vmem:[#allocation2] sm:$0xff] %v178
  // Predicated region
  $region18: #{forward.7} parent=0 // pred_check
    %p180 = pneg %p14
  $region19: #{forward.7} parent=0 // pred_check_branch
    %182 = sbr.rel (%p180) target = $region21
  $region20: #{forward.7} parent=0 // pred_region
    %v183 = vld [vmem:[#allocation2] sm:$0xff]
    %v184 = vld [vmem:[%s2] sm:$0x1]
    %v186 = vperm.slane %v184, 0
    %v188 = vadd.f32 %v183, %v186
    %189 = vst [vmem:[%s3] sm:$0xff] %v188
  $region21: #{forward.7} parent=0 // pred_fallthru
    _
  // Predicated region
  $region22: #{forward.7} parent=0 // pred_check
    _
  $region23: #{forward.7} parent=0 // pred_check_branch
    %191 = sbr.rel (0) target = $region25
  $region24: #{forward.7} parent=0 // pred_region
    _
  $region25: #{forward.7} parent=0 // pred_fallthru
    _
  // Predicated region
  $region26: #{forward.7} parent=0 // pred_check
    _
  $region27: #{forward.7} parent=0 // pred_check_branch
    %193 = sbr.rel (0) target = $region29
  $region28: #{forward.7} parent=0 // pred_region
    _
  $region29: #{forward.7} parent=0 // pred_fallthru
    _

// kernel: forward.8
$region0: #{forward.8}
  #allocation0 [shape = 'u32[]', space=smem, size = 0x4, offset = 0x4, fixed_abs, tag = 'smem constant byte address 0x4 - core index']
  #allocation1 [shape = 'u32[72,128]{1,0:T(1,128)}', space=vmem, size = 0x9000, scoped, tag = 'internal scratch']
  #allocation2 [shape = 'f32[16,384]{1,0:T(8,128)}', space=vmem, size = 0x6000, scoped, tag = 'scratch operand']
  %s0 = inlined_call_operand.vmem [shape: f32[16,128], index: 0, kind: input, shape index: {}]
  %s1 = inlined_call_operand.vmem [shape: bf16[128,768], index: 1, kind: input, shape index: {}]
  %s2 = inlined_call_operand.vmem [shape: f32[1,768], index: 2, kind: input, shape index: {}]
  %s3 = inlined_call_operand.vmem [shape: f32[1,128], index: 3, kind: input, shape index: {}]
  %s4 = inlined_call_operand.vmem [shape: f32[1,128], index: 4, kind: input, shape index: {}]
  %s5 = inlined_call_operand.vmem [shape: f32[16,768], index: 5, kind: output, shape index: {}]
  %s6 = sld [smem:[#allocation0]]
  $region106: #{forward.8} parent=0
    _
  %s8 = ssub.s32 1, %s6
  %s9 = scalar_select 0, %s8, %s6
  $region1: #{forward.8} parent=0
    #allocation3 [shape = 'u8[196608]{0}', space=vmem, size = 0x30000, scoped, tag = 'input window, operand 1']
    #allocation4 [shape = 'u8[49152]{0}', space=vmem, size = 0xc000, scoped, tag = 'output window, operand 0']
    loop: start=0, step=1, limit=4
    $region2: #{forward.8} parent=1 // loop_pre_header
      _
    $region3: #{forward.8} parent=1 // loop_header
      %s11 = sphi 0, %s15
      %p12 = scmp.ge.s32.totalorder %s11, 4
      %s18 = sphi 0, %s37
      %s19 = sphi 0, %s33
      %s20 = sphi 0, %s29
      %s21 = sphi 0, %s18
      %s22 = sphi 0, %s19
      %s23 = sphi 0, %s20
      %s24 = sphi 0, %s21
      %s25 = sphi 0, %s22
      %s26 = sphi 0, %s23
      %s42 = sphi 0, %s44
      %s45 = sphi 0, %s42
      %s46 = sphi 0, %s45
      %s62 = sphi 0, %s46
      %s70 = sphi 0, %s72
      %s73 = sphi 0, %s70
      %s74 = sphi 0, %s73
      %s90 = sphi 0, %s74
      %s96 = sphi 0, %s98
      %s99 = sphi 0, %s96
      %s100 = sphi 0, %s99
      %s116 = sphi 0, %s100
      %s122 = sphi 0, %s124
      %s125 = sphi 0, %s122
      %s126 = sphi 0, %s125
      %s142 = sphi 0, %s126
      %s148 = sphi 0, %s150
      %s151 = sphi 0, %s148
      %s152 = sphi 0, %s151
      %s168 = sphi 0, %s152
      %s176 = sphi 0, %s178
      %s179 = sphi 0, %s176
      %s180 = sphi 0, %s179
      %s196 = sphi 0, %s180
    $region4: #{forward.8} parent=1 // loop_header_branch
      %14 = sbr.rel (%p12) target = $region8
    $region5: #{forward.8} parent=1 // loop_body
      %s16 = ssub.s32 %s11, 1
      %s17 = ssub.s32 %s11, 2
      %s27 = sadd.s32 1, %s20
      %p28 = scmp.ge.s32.totalorder %s27, 1
      %s29 = scalar_select %p28, 0, %s27
      %s30 = sadd.s32 1, %s19
      %s31 = scalar_select %p28, %s30, %s19
      %p32 = scmp.ge.s32.totalorder %s31, 2
      %s33 = scalar_select %p32, 0, %s31
      %s34 = sadd.s32 1, %s18
      %s35 = scalar_select %p32, %s34, %s18
      %p36 = scmp.ge.s32.totalorder %s35, 1
      %s37 = scalar_select %p36, 0, %s35
      %s38 = ssub.s32 %s18, %s37
      %s39 = ssub.s32 %s20, %s29
      %s40 = sor.u32 %s38, %s39
      %p41 = scmp.eq.s32.totalorder %s40, 0
      %s43 = sadd.s32 %s42, 1
      %s44 = scalar_select %p41, %s42, %s43
      %p47 = pneg %p41
      %p48 = scmp.eq.s32.totalorder %s11, 1
      %p49 = por %p47, %p48
      %p50 = scmp.ne.s32.totalorder %s42, %s45
      %p51 = scmp.eq.s32.totalorder %s11, 0
      %p52 = por %p50, %p51
      %p53 = scmp.ne.s32.totalorder %s42, %s45
      %p54 = scmp.eq.s32.totalorder %s16, 1
      %p55 = por %p53, %p54
      %p56 = scmp.ne.s32.totalorder %s45, %s46
      %p57 = scmp.eq.s32.totalorder %s16, 0
      %p58 = por %p56, %p57
      %p59 = scmp.ne.s32.totalorder %s45, %s46
      %p60 = scmp.eq.s32.totalorder %s17, 1
      %p61 = por %p59, %p60
      %p63 = scmp.ne.s32.totalorder %s46, %s62
      %p64 = scmp.eq.s32.totalorder %s17, 0
      %p65 = por %p63, %p64
      %s66 = ssub.s32 %s20, %s29
      %s67 = ssub.s32 %s19, %s33
      %s68 = sor.u32 %s66, %s67
      %p69 = scmp.eq.s32.totalorder %s68, 0
      %s71 = sadd.s32 %s70, 1
      %s72 = scalar_select %p69, %s70, %s71
      %p75 = pneg %p69
      %p76 = scmp.eq.s32.totalorder %s11, 1
      %p77 = por %p75, %p76
      %p78 = scmp.ne.s32.totalorder %s70, %s73
      %p79 = scmp.eq.s32.totalorder %s11, 0
      %p80 = por %p78, %p79
      %p81 = scmp.ne.s32.totalorder %s70, %s73
      %p82 = scmp.eq.s32.totalorder %s16, 1
      %p83 = por %p81, %p82
      %p84 = scmp.ne.s32.totalorder %s73, %s74
      %p85 = scmp.eq.s32.totalorder %s16, 0
      %p86 = por %p84, %p85
      %p87 = scmp.ne.s32.totalorder %s73, %s74
      %p88 = scmp.eq.s32.totalorder %s17, 1
      %p89 = por %p87, %p88
      %p91 = scmp.ne.s32.totalorder %s74, %s90
      %p92 = scmp.eq.s32.totalorder %s17, 0
      %p93 = por %p91, %p92
      %s94 = ssub.s32 %s19, %s33
      %p95 = scmp.eq.s32.totalorder %s94, 0
      %s97 = sadd.s32 %s96, 1
      %s98 = scalar_select %p95, %s96, %s97
      %p101 = pneg %p95
      %p102 = scmp.eq.s32.totalorder %s11, 1
      %p103 = por %p101, %p102
      %p104 = scmp.ne.s32.totalorder %s96, %s99
      %p105 = scmp.eq.s32.totalorder %s11, 0
      %p106 = por %p104, %p105
      %p107 = scmp.ne.s32.totalorder %s96, %s99
      %p108 = scmp.eq.s32.totalorder %s16, 1
      %p109 = por %p107, %p108
      %p110 = scmp.ne.s32.totalorder %s99, %s100
      %p111 = scmp.eq.s32.totalorder %s16, 0
      %p112 = por %p110, %p111
      %p113 = scmp.ne.s32.totalorder %s99, %s100
      %p114 = scmp.eq.s32.totalorder %s17, 1
      %p115 = por %p113, %p114
      %p117 = scmp.ne.s32.totalorder %s100, %s116
      %p118 = scmp.eq.s32.totalorder %s17, 0
      %p119 = por %p117, %p118
      %s120 = ssub.s32 %s20, %s29
      %p121 = scmp.eq.s32.totalorder %s120, 0
      %s123 = sadd.s32 %s122, 1
      %s124 = scalar_select %p121, %s122, %s123
      %p127 = pneg %p121
      %p128 = scmp.eq.s32.totalorder %s11, 1
      %p129 = por %p127, %p128
      %p130 = scmp.ne.s32.totalorder %s122, %s125
      %p131 = scmp.eq.s32.totalorder %s11, 0
      %p132 = por %p130, %p131
      %p133 = scmp.ne.s32.totalorder %s122, %s125
      %p134 = scmp.eq.s32.totalorder %s16, 1
      %p135 = por %p133, %p134
      %p136 = scmp.ne.s32.totalorder %s125, %s126
      %p137 = scmp.eq.s32.totalorder %s16, 0
      %p138 = por %p136, %p137
      %p139 = scmp.ne.s32.totalorder %s125, %s126
      %p140 = scmp.eq.s32.totalorder %s17, 1
      %p141 = por %p139, %p140
      %p143 = scmp.ne.s32.totalorder %s126, %s142
      %p144 = scmp.eq.s32.totalorder %s17, 0
      %p145 = por %p143, %p144
      %s146 = ssub.s32 %s20, %s29
      %p147 = scmp.eq.s32.totalorder %s146, 0
      %s149 = sadd.s32 %s148, 1
      %s150 = scalar_select %p147, %s148, %s149
      %p153 = pneg %p147
      %p154 = scmp.eq.s32.totalorder %s11, 1
      %p155 = por %p153, %p154
      %p156 = scmp.ne.s32.totalorder %s148, %s151
      %p157 = scmp.eq.s32.totalorder %s11, 0
      %p158 = por %p156, %p157
      %p159 = scmp.ne.s32.totalorder %s148, %s151
      %p160 = scmp.eq.s32.totalorder %s16, 1
      %p161 = por %p159, %p160
      %p162 = scmp.ne.s32.totalorder %s151, %s152
      %p163 = scmp.eq.s32.totalorder %s16, 0
      %p164 = por %p162, %p163
      %p165 = scmp.ne.s32.totalorder %s151, %s152
      %p166 = scmp.eq.s32.totalorder %s17, 1
      %p167 = por %p165, %p166
      %p169 = scmp.ne.s32.totalorder %s152, %s168
      %p170 = scmp.eq.s32.totalorder %s17, 0
      %p171 = por %p169, %p170
      %s172 = ssub.s32 %s18, %s37
      %s173 = ssub.s32 %s19, %s33
      %s174 = sor.u32 %s172, %s173
      %p175 = scmp.eq.s32.totalorder %s174, 0
      %s177 = sadd.s32 %s176, 1
      %s178 = scalar_select %p175, %s176, %s177
      %p181 = pneg %p175
      %p182 = scmp.eq.s32.totalorder %s11, 1
      %p183 = por %p181, %p182
      %p184 = scmp.ne.s32.totalorder %s176, %s179
      %p185 = scmp.eq.s32.totalorder %s11, 0
      %p186 = por %p184, %p185
      %p187 = scmp.ne.s32.totalorder %s176, %s179
      %p188 = scmp.eq.s32.totalorder %s16, 1
      %p189 = por %p187, %p188
      %p190 = scmp.ne.s32.totalorder %s179, %s180
      %p191 = scmp.eq.s32.totalorder %s16, 0
      %p192 = por %p190, %p191
      %p193 = scmp.ne.s32.totalorder %s179, %s180
      %p194 = scmp.eq.s32.totalorder %s17, 1
      %p195 = por %p193, %p194
      %p197 = scmp.ne.s32.totalorder %s180, %s196
      %p198 = scmp.eq.s32.totalorder %s17, 0
      %p199 = por %p197, %p198
      %p200 = scmp.le.s32.totalorder 1, %s11
      %p201 = scmp.lt.s32.totalorder %s11, 3
      %p202 = pnand %p200, %p201
      %p203 = pneg %p202
      // Predicated region
      $region9: #{forward.8} parent=5 // pred_check
        _
      $region10: #{forward.8} parent=5 // pred_check_branch
        %205 = sbr.rel (%p202) target = $region12
      $region11: #{forward.8} parent=5 // pred_region
        %s206 = ssub.s32 %s11, 1
        // Predicated region
        $region13: #{forward.8} parent=11 // pred_check
          %p207 = pneg %p58
        $region14: #{forward.8} parent=11 // pred_check_branch
          %209 = sbr.rel (%p207) target = $region16
        $region15: #{forward.8} parent=11 // pred_region
          %s210 = smul.u32 2, %s21
          %p211 = scmp.lt.s32.totalorder %s210, 1
          %s212 = scalar_select %p211, %s210, 1
          %p213 = scmp.lt.s32.totalorder %s23, 0
          %s214 = scalar_select %p213, %s23, 0
          %s215 = sadd.s32 %s214, %s212
          %s216 = smul.addr %s215, 8
          %s217 = scalar_lea.vmem %s0, %s216
          %s218 = smul.u32 2, %s21
        $region16: #{forward.8} parent=11 // pred_fallthru
          _
        // Predicated region
        $region17: #{forward.8} parent=11 // pred_check
          %p219 = pneg %p138
        $region18: #{forward.8} parent=11 // pred_check_branch
          %221 = sbr.rel (%p219) target = $region20
        $region19: #{forward.8} parent=11 // pred_region
          %p222 = scmp.lt.s32.totalorder %s23, 0
          %s223 = scalar_select %p222, %s23, 0
          %s224 = scalar_lea.vmem %s3, %s223
        $region20: #{forward.8} parent=11 // pred_fallthru
          _
        // Predicated region
        $region21: #{forward.8} parent=11 // pred_check
          %p225 = pneg %p164
        $region22: #{forward.8} parent=11 // pred_check_branch
          %227 = sbr.rel (%p225) target = $region24
        $region23: #{forward.8} parent=11 // pred_region
          %p228 = scmp.lt.s32.totalorder %s23, 0
          %s229 = scalar_select %p228, %s23, 0
          %s230 = scalar_lea.vmem %s4, %s229
        $region24: #{forward.8} parent=11 // pred_fallthru
          _
      $region12: #{forward.8} parent=5 // pred_fallthru
        _
      %p231 = scmp.lt.s32.totalorder %s11, 2
      // Predicated region
      $region25: #{forward.8} parent=5 // pred_check
        %p232 = pneg %p231
      $region26: #{forward.8} parent=5 // pred_check_branch
        %234 = sbr.rel (%p232) target = $region28
      $region27: #{forward.8} parent=5 // pred_region
        // Predicated region
        $region29: #{forward.8} parent=27 // pred_check
          %p235 = pneg %p80
        $region30: #{forward.8} parent=27 // pred_check_branch
          %237 = sbr.rel (%p235) target = $region32
        $region31: #{forward.8} parent=27 // pred_region
          %s238 = sand.u32 %s70, 1
          %s239 = sand.u32 %s70, 1
          %s240 = smul.addr %s239, 192
          %s241 = scalar_lea.vmem [#allocation3], %s240
          %s242 = smul.u32 16, %s20
          %s243 = smul.u32 3, %s19
          %s244 = smul.addr %s242, 6
          %s245 = sadd.s32 %s243, %s244
          %s246 = smul.addr %s245, 4
          %s247 = scalar_lea.vmem %s1, %s246
          // Predicated region
          $region33: #{forward.8} parent=31 // pred_check
            _
          $region34: #{forward.8} parent=31 // pred_check_branch
            %249 = sbr.rel (0) target = $region36
          $region35: #{forward.8} parent=31 // pred_region
            // Predicated region
            $region37: #{forward.8} parent=35 // pred_check
              _
            $region38: #{forward.8} parent=35 // pred_check_branch
              %251 = sbr.rel (0) target = $region40
            $region39: #{forward.8} parent=35 // pred_region
              %s252 = scalar_lea.vmem %s247, 8
              %s253 = scalar_lea.vmem %s241, 8 [#allocation3]
              loop: start=0, step=1, limit=1
              $region41: #{forward.8} parent=39 // loop_pre_header
                _
              $region42: #{forward.8} parent=39 // loop_header
                %s255 = sphi 0, %s259
                %p256 = scmp.ge.s32.totalorder %s255, 1
                %s260 = sphi %s247, %s247
                %s261 = sphi %s241, %s241
              $region43: #{forward.8} parent=39 // loop_header_branch
                %258 = sbr.rel (%p256) target = $region47
              $region44: #{forward.8} parent=39 // loop_body
                %v262 = vld [vmem:[%s260] sm:$0xff]
                %263 = vst [vmem:[%s261] sm:$0xff] %v262
                %v264 = vld [vmem:[%s260 + $0x18] sm:$0xff]
                %265 = vst [vmem:[%s261 + $0xc] sm:$0xff] %v264
                %v266 = vld [vmem:[%s260 + $0x30] sm:$0xff]
                %267 = vst [vmem:[%s261 + $0x18] sm:$0xff] %v266
                %v268 = vld [vmem:[%s260 + $0x48] sm:$0xff]
                %269 = vst [vmem:[%s261 + $0x24] sm:$0xff] %v268
                %v270 = vld [vmem:[%s260 + $0x60] sm:$0xff]
                %271 = vst [vmem:[%s261 + $0x30] sm:$0xff] %v270
                %v272 = vld [vmem:[%s260 + $0x78] sm:$0xff]
                %273 = vst [vmem:[%s261 + $0x3c] sm:$0xff] %v272
                %v274 = vld [vmem:[%s260 + $0x90] sm:$0xff]
                %275 = vst [vmem:[%s261 + $0x48] sm:$0xff] %v274
                %v276 = vld [vmem:[%s260 + $0xa8] sm:$0xff]
                %277 = vst [vmem:[%s261 + $0x54] sm:$0xff] %v276
                %v278 = vld [vmem:[%s260 + $0xc0] sm:$0xff]
                %279 = vst [vmem:[%s261 + $0x60] sm:$0xff] %v278
                %v280 = vld [vmem:[%s260 + $0xd8] sm:$0xff]
                %281 = vst [vmem:[%s261 + $0x6c] sm:$0xff] %v280
                %v282 = vld [vmem:[%s260 + $0xf0] sm:$0xff]
                %283 = vst [vmem:[%s261 + $0x78] sm:$0xff] %v282
                %v284 = vld [vmem:[%s260 + $0x108] sm:$0xff]
                %285 = vst [vmem:[%s261 + $0x84] sm:$0xff] %v284
                %v286 = vld [vmem:[%s260 + $0x120] sm:$0xff]
                %287 = vst [vmem:[%s261 + $0x90] sm:$0xff] %v286
                %v288 = vld [vmem:[%s260 + $0x138] sm:$0xff]
                %289 = vst [vmem:[%s261 + $0x9c] sm:$0xff] %v288
                %v290 = vld [vmem:[%s260 + $0x150] sm:$0xff]
                %291 = vst [vmem:[%s261 + $0xa8] sm:$0xff] %v290
                %v292 = vld [vmem:[%s260 + $0x168] sm:$0xff]
                %293 = vst [vmem:[%s261 + $0xb4] sm:$0xff] %v292
              $region45: #{forward.8} parent=39 // loop_footer
                %s259 = sadd.s32 1, %s255
              $region46: #{forward.8} parent=39 // loop_footer_branch
                %254 = sbr.rel target = $region42
              $region47: #{forward.8} parent=39 // loop_exit
                _
              %s295 = ssub.s32 16, 1
              loop: start=0, step=1, limit=1
              $region48: #{forward.8} parent=39 // loop_pre_header
                _
              $region49: #{forward.8} parent=39 // loop_header
                %s297 = sphi 0, %s301
                %p298 = scmp.ge.s32.totalorder %s297, 1
                %s302 = sphi %s252, %s252
                %s303 = sphi %s253, %s253
              $region50: #{forward.8} parent=39 // loop_header_branch
                %300 = sbr.rel (%p298) target = $region54
              $region51: #{forward.8} parent=39 // loop_body
                %v304 = vld [vmem:[%s302] sm:%s295]
                %305 = vst [vmem:[%s303] sm:%s295] %v304
                %v306 = vld [vmem:[%s302 + $0x18] sm:%s295]
                %307 = vst [vmem:[%s303 + $0xc] sm:%s295] %v306
                %v308 = vld [vmem:[%s302 + $0x30] sm:%s295]
                %309 = vst [vmem:[%s303 + $0x18] sm:%s295] %v308
                %v310 = vld [vmem:[%s302 + $0x48] sm:%s295]
                %311 = vst [vmem:[%s303 + $0x24] sm:%s295] %v310
                %v312 = vld [vmem:[%s302 + $0x60] sm:%s295]
                %313 = vst [vmem:[%s303 + $0x30] sm:%s295] %v312
                %v314 = vld [vmem:[%s302 + $0x78] sm:%s295]
                %315 = vst [vmem:[%s303 + $0x3c] sm:%s295] %v314
                %v316 = vld [vmem:[%s302 + $0x90] sm:%s295]
                %317 = vst [vmem:[%s303 + $0x48] sm:%s295] %v316
                %v318 = vld [vmem:[%s302 + $0xa8] sm:%s295]
                %319 = vst [vmem:[%s303 + $0x54] sm:%s295] %v318
                %v320 = vld [vmem:[%s302 + $0xc0] sm:%s295]
                %321 = vst [vmem:[%s303 + $0x60] sm:%s295] %v320
                %v322 = vld [vmem:[%s302 + $0xd8] sm:%s295]
                %323 = vst [vmem:[%s303 + $0x6c] sm:%s295] %v322
                %v324 = vld [vmem:[%s302 + $0xf0] sm:%s295]
                %325 = vst [vmem:[%s303 + $0x78] sm:%s295] %v324
                %v326 = vld [vmem:[%s302 + $0x108] sm:%s295]
                %327 = vst [vmem:[%s303 + $0x84] sm:%s295] %v326
                %v328 = vld [vmem:[%s302 + $0x120] sm:%s295]
                %329 = vst [vmem:[%s303 + $0x90] sm:%s295] %v328
                %v330 = vld [vmem:[%s302 + $0x138] sm:%s295]
                %331 = vst [vmem:[%s303 + $0x9c] sm:%s295] %v330
                %v332 = vld [vmem:[%s302 + $0x150] sm:%s295]
                %333 = vst [vmem:[%s303 + $0xa8] sm:%s295] %v332
                %v334 = vld [vmem:[%s302 + $0x168] sm:%s295]
                %335 = vst [vmem:[%s303 + $0xb4] sm:%s295] %v334
              $region52: #{forward.8} parent=39 // loop_footer
                %s301 = sadd.s32 1, %s297
              $region53: #{forward.8} parent=39 // loop_footer_branch
                %296 = sbr.rel target = $region49
              $region54: #{forward.8} parent=39 // loop_exit
                _
            $region40: #{forward.8} parent=35 // pred_fallthru
              _
          $region36: #{forward.8} parent=31 // pred_fallthru
            _
          %336 = vnop
        $region32: #{forward.8} parent=27 // pred_fallthru
          _
        // Predicated region
        $region55: #{forward.8} parent=27 // pred_check
          %p337 = pneg %p106
        $region56: #{forward.8} parent=27 // pred_check_branch
          %339 = sbr.rel (%p337) target = $region58
        $region57: #{forward.8} parent=27 // pred_region
          %s340 = smul.u32 3, %s19
          %p341 = scmp.lt.s32.totalorder %s340, 5
          %s342 = scalar_select %p341, %s340, 5
          %s343 = scalar_lea.vmem %s2, %s342
          %s344 = smul.u32 3, %s19
        $region58: #{forward.8} parent=27 // pred_fallthru
          _
      $region28: #{forward.8} parent=5 // pred_fallthru
        _
      %p345 = scmp.le.s32.totalorder 1, %s11
      %p346 = scmp.lt.s32.totalorder %s11, 3
      %p347 = pnand %p345, %p346
      %p348 = pneg %p347
      // Predicated region
      $region59: #{forward.8} parent=5 // pred_check
        _
      $region60: #{forward.8} parent=5 // pred_check_branch
        %350 = sbr.rel (%p347) target = $region62
      $region61: #{forward.8} parent=5 // pred_region
        %s351 = ssub.s32 %s11, 1
        %s352 = sand.u32 %s73, 1
        %s353 = sand.u32 %s73, 1
        %s354 = smul.addr %s353, 192
        %s355 = scalar_lea.vmem [#allocation3], %s354
        // Predicated region
        $region63: #{forward.8} parent=61 // pred_check
          %p356 = pneg %p86
        $region64: #{forward.8} parent=61 // pred_check_branch
          %358 = sbr.rel (%p356) target = $region66
        $region65: #{forward.8} parent=61 // pred_region
          _
        $region66: #{forward.8} parent=61 // pred_fallthru
          _
        %s359 = smul.u32 2, %s21
        %p360 = scmp.lt.s32.totalorder %s359, 1
        %s361 = scalar_select %p360, %s359, 1
        %p362 = scmp.lt.s32.totalorder %s23, 0
        %s363 = scalar_select %p362, %s23, 0
        %s364 = sadd.s32 %s363, %s361
        %s365 = smul.addr %s364, 8
        %s366 = scalar_lea.vmem %s0, %s365
        %p367 = pneg %p58
        %p368 = pneg %p55
        %s369 = sand.u32 %s73, 1
        %s370 = sand.u32 %s73, 1
        %s371 = smul.addr %s370, 192
        %s372 = scalar_lea.vmem [#allocation3], %s371
        %p373 = pneg %p86
        %p374 = pneg %p83
        %s375 = smul.u32 3, %s22
        %p376 = scmp.lt.s32.totalorder %s375, 5
        %s377 = scalar_select %p376, %s375, 5
        %s378 = scalar_lea.vmem %s2, %s377
        %p379 = pneg %p112
        %p380 = pneg %p109
        %p381 = scmp.lt.s32.totalorder %s23, 0
        %s382 = scalar_select %p381, %s23, 0
        %s383 = scalar_lea.vmem %s3, %s382
        %p384 = pneg %p138
        %p385 = pneg %p135
        %p386 = scmp.lt.s32.totalorder %s23, 0
        %s387 = scalar_select %p386, %s23, 0
        %s388 = scalar_lea.vmem %s4, %s387
        %p389 = pneg %p164
        %p390 = pneg %p161
        %p391 = pneg %p192
        %p392 = pneg %p189
        %s393 = sand.u32 %s179, 1
        %s394 = sand.u32 %s179, 1
        %s395 = smul.addr %s394, 48
        %s396 = scalar_lea.vmem [#allocation4], %s395
        %s397 = smul.u32 2, %s21
        %p398 = scmp.lt.s32.totalorder %s397, 1
        %s399 = scalar_select %p398, %s397, 1
        %p400 = scmp.lt.s32.totalorder %s23, 0
        %s401 = scalar_select %p400, %s23, 0
        %s402 = sadd.s32 %s401, %s399
        %s403 = smul.addr %s402, 8
        %s404 = scalar_lea.vmem %s0, %s403
        %s405 = smul.u32 2, %s21
        %s406 = smul.u32 16, %s23
        %s407 = smul.u32 3, %s22
        %s408 = smul.u32 3, %s22
        %p409 = scmp.lt.s32.totalorder %s408, 5
        %s410 = scalar_select %p409, %s408, 5
        %s411 = scalar_lea.vmem %s2, %s410
        %s412 = smul.u32 3, %s22
        %p413 = scmp.lt.s32.totalorder %s23, 0
        %s414 = scalar_select %p413, %s23, 0
        %s415 = scalar_lea.vmem %s3, %s414
        %p416 = scmp.lt.s32.totalorder %s23, 0
        %s417 = scalar_select %p416, %s23, 0
        %s418 = scalar_lea.vmem %s4, %s417
        %s419 = smul.u32 2, %s21
        %s420 = smul.u32 3, %s22
        %p421 = scmp.eq.s32.totalorder %s23, 0
        // Predicated region
        $region67: #{forward.8} parent=61 // pred_check
          %p422 = pneg %p421
        $region68: #{forward.8} parent=61 // pred_check_branch
          %424 = sbr.rel (%p422) target = $region70
        $region69: #{forward.8} parent=61 // pred_region
          %425 = vst [vmem:[#allocation2] sm:$0xff] 0.0
          %426 = vst [vmem:[#allocation2 + $0x8] sm:$0xff] 0.0
          %427 = vst [vmem:[#allocation2 + $0x10] sm:$0xff] 0.0
          %428 = vst [vmem:[#allocation2 + $0x18] sm:$0xff] 0.0
          %429 = vst [vmem:[#allocation2 + $0x20] sm:$0xff] 0.0
          %430 = vst [vmem:[#allocation2 + $0x28] sm:$0xff] 0.0
        $region70: #{forward.8} parent=61 // pred_fallthru
          _
        %v431 = vld [vmem:[%s404] sm:$0xff]
        %v432 = vld [vmem:[%s404 + $0x8] sm:$0xff]
        %v433 = vlaneseq
        %v434 = vand.u32 %v433, 127
        %vm435 = vcmp.lt.s32.totalorder %v434, 32
        %v436 = vsel %vm435, %v431, 0.0
        %v437 = vsel %vm435, %v432, 0.0
        %438 = vadd.xlane.f32.xlu0 %v436
        %v439 = vpop.xlane.xlu0 %438
        %440 = vadd.xlane.f32.xlu0 %v437
        %v441 = vpop.xlane.xlu0 %440
        %v442 = vmul.f32 %v439, 0.03125
        %v443 = vmul.f32 %v441, 0.03125
        %v444 = vsub.f32 %v436, %v442
        %v445 = vsub.f32 %v437, %v443
        %v446 = vsel %vm435, %v444, 0.0
        %v447 = vsel %vm435, %v445, 0.0
        %v448 = vmul.f32 %v446, %v446
        %v449 = vmul.f32 %v447, %v447
        %450 = vadd.xlane.f32.xlu0 %v448
        %v451 = vpop.xlane.xlu0 %450
        %452 = vadd.xlane.f32.xlu0 %v449
        %v453 = vpop.xlane.xlu0 %452
        %v454 = vmul.f32 %v451, 0.03125
        %v455 = vmul.f32 %v453, 0.03125
        %v456 = vadd.f32 %v454, 1e-06
        %v457 = vadd.f32 %v455, 1e-06
        %v458 = vrsqrt.pop %v456
        %v459 = vmul.f32 %v458, %v456
        %v460 = vmul.f32 %v459, %v458
        %v461 = vmul.f32 0.5, %v460
        %v462 = vsub.f32 1.5, %v461
        %v463 = vmul.f32 %v458, %v462
        %vm464 = vweird.f32 %v456
        %vm465 = vweird.f32 %v458
        %vm466 = vmor %vm464, %vm465
        %v467 = vsel %vm466, %v458, %v463
        %v468 = vrsqrt.pop %v457
        %v469 = vmul.f32 %v468, %v457
        %v470 = vmul.f32 %v469, %v468
        %v471 = vmul.f32 0.5, %v470
        %v472 = vsub.f32 1.5, %v471
        %v473 = vmul.f32 %v468, %v472
        %vm474 = vweird.f32 %v457
        %vm475 = vweird.f32 %v468
        %vm476 = vmor %vm474, %vm475
        %v477 = vsel %vm476, %v468, %v473
        %v478 = vmul.f32 %v446, %v467
        %v479 = vmul.f32 %v447, %v477
        %v480 = vld [vmem:[%s415] sm:$0x1]
        %v482 = vperm.slane %v480, 0
        %v484 = vmul.f32 %v478, %v482
        %v485 = vmul.f32 %v479, %v482
        %v486 = vld [vmem:[%s418] sm:$0x1]
        %v488 = vperm.slane %v486, 0
        %v490 = vadd.f32 %v484, %v488
        %v491 = vadd.f32 %v485, %v488
        %v492 = vld [vmem:[#allocation2] sm:$0xff]
        %v493 = vld [vmem:[#allocation2 + $0x8] sm:$0xff]
        %v494 = vld [vmem:[#allocation2 + $0x10] sm:$0xff]
        %v495 = vld [vmem:[#allocation2 + $0x18] sm:$0xff]
        %v496 = vld [vmem:[#allocation2 + $0x20] sm:$0xff]
        %v497 = vld [vmem:[#allocation2 + $0x28] sm:$0xff]
        %v498 = vpack.c.bf16 %v491, %v490
        %v499 = vld [vmem:[%s355] sm:$0xff]
        %v500 = vld [vmem:[%s355 + $0x8] sm:$0xf]
        %v501 = vld [vmem:[%s355 + $0xc] sm:$0xff]
        %v502 = vld [vmem:[%s355 + $0x14] sm:$0xf]
        %v503 = vld [vmem:[%s355 + $0x18] sm:$0xff]
        %v504 = vld [vmem:[%s355 + $0x20] sm:$0xf]
        %v505 = vld [vmem:[%s355 + $0x24] sm:$0xff]
        %v506 = vld [vmem:[%s355 + $0x2c] sm:$0xf]
        %v507 = vld [vmem:[%s355 + $0x30] sm:$0xff]
        %v508 = vld [vmem:[%s355 + $0x38] sm:$0xf]
        %v509 = vld [vmem:[%s355 + $0x3c] sm:$0xff]
        %v510 = vld [vmem:[%s355 + $0x44] sm:$0xf]
        %v511 = vld [vmem:[%s355 + $0x48] sm:$0xff]
        %v512 = vld [vmem:[%s355 + $0x50] sm:$0xf]
        %v513 = vld [vmem:[%s355 + $0x54] sm:$0xff]
        %v514 = vld [vmem:[%s355 + $0x5c] sm:$0xf]
        %v515 = vld [vmem:[%s355 + $0x60] sm:$0xff]
        %v516 = vld [vmem:[%s355 + $0x68] sm:$0xf]
        %v517 = vld [vmem:[%s355 + $0x6c] sm:$0xff]
        %v518 = vld [vmem:[%s355 + $0x74] sm:$0xf]
        %v519 = vld [vmem:[%s355 + $0x78] sm:$0xff]
        %v520 = vld [vmem:[%s355 + $0x80] sm:$0xf]
        %v521 = vld [vmem:[%s355 + $0x84] sm:$0xff]
        %v522 = vld [vmem:[%s355 + $0x8c] sm:$0xf]
        %v523 = vld [vmem:[%s355 + $0x90] sm:$0xff]
        %v524 = vld [vmem:[%s355 + $0x98] sm:$0xf]
        %v525 = vld [vmem:[%s355 + $0x9c] sm:$0xff]
        %v526 = vld [vmem:[%s355 + $0xa4] sm:$0xf]
        %v527 = vld [vmem:[%s355 + $0xa8] sm:$0xff]
        %v528 = vld [vmem:[%s355 + $0xb0] sm:$0xf]
        %v529 = vld [vmem:[%s355 + $0xb4] sm:$0xff]
        %v530 = vld [vmem:[%s355 + $0xbc] sm:$0xf]
        %v563 = vunpack.c.l.b16 %v499
        %v564 = vunpack.c.h.b16 %v499
        %v565 = vunpack.c.l.b16 %v500
        %v566 = vunpack.c.l.b16 %v501
        %v567 = vunpack.c.h.b16 %v501
        %v568 = vunpack.c.l.b16 %v502
        %v569 = vunpack.c.l.b16 %v503
        %v570 = vunpack.c.h.b16 %v503
        %v571 = vunpack.c.l.b16 %v504
        %v572 = vunpack.c.l.b16 %v505
        %v573 = vunpack.c.h.b16 %v505
        %v574 = vunpack.c.l.b16 %v506
        %v575 = vunpack.c.l.b16 %v507
        %v576 = vunpack.c.h.b16 %v507
        %v577 = vunpack.c.l.b16 %v508
        %v578 = vunpack.c.l.b16 %v509
        %v579 = vunpack.c.h.b16 %v509
        %v580 = vunpack.c.l.b16 %v510
        %v581 = vunpack.c.l.b16 %v511
        %v582 = vunpack.c.h.b16 %v511
        %v583 = vunpack.c.l.b16 %v512
        %v584 = vunpack.c.l.b16 %v513
        %v585 = vunpack.c.h.b16 %v513
        %v586 = vunpack.c.l.b16 %v514
        %v587 = vunpack.c.l.b16 %v515
        %v588 = vunpack.c.h.b16 %v515
        %v589 = vunpack.c.l.b16 %v516
        %v590 = vunpack.c.l.b16 %v517
        %v591 = vunpack.c.h.b16 %v517
        %v592 = vunpack.c.l.b16 %v518
        %v593 = vunpack.c.l.b16 %v519
        %v594 = vunpack.c.h.b16 %v519
        %v595 = vunpack.c.l.b16 %v520
        %v596 = vunpack.c.l.b16 %v521
        %v597 = vunpack.c.h.b16 %v521
        %v598 = vunpack.c.l.b16 %v522
        %v599 = vunpack.c.l.b16 %v523
        %v600 = vunpack.c.h.b16 %v523
        %v601 = vunpack.c.l.b16 %v524
        %v602 = vunpack.c.l.b16 %v525
        %v603 = vunpack.c.h.b16 %v525
        %v604 = vunpack.c.l.b16 %v526
        %v605 = vunpack.c.l.b16 %v527
        %v606 = vunpack.c.h.b16 %v527
        %v607 = vunpack.c.l.b16 %v528
        %v608 = vunpack.c.l.b16 %v529
        %v609 = vunpack.c.h.b16 %v529
        %v610 = vunpack.c.l.b16 %v530
        %v611 = vpack.c.b16 %v566, %v563
        %v612 = vpack.c.b16 %v567, %v564
        %v613 = vpack.c.b16 %v568, %v565
        %v614 = vpack.c.b16 %v572, %v569
        %v615 = vpack.c.b16 %v573, %v570
        %v616 = vpack.c.b16 %v574, %v571
        %v617 = vpack.c.b16 %v578, %v575
        %v618 = vpack.c.b16 %v579, %v576
        %v619 = vpack.c.b16 %v580, %v577
        %v620 = vpack.c.b16 %v584, %v581
        %v621 = vpack.c.b16 %v585, %v582
        %v622 = vpack.c.b16 %v586, %v583
        %v623 = vpack.c.b16 %v590, %v587
        %v624 = vpack.c.b16 %v591, %v588
        %v625 = vpack.c.b16 %v592, %v589
        %v626 = vpack.c.b16 %v596, %v593
        %v627 = vpack.c.b16 %v597, %v594
        %v628 = vpack.c.b16 %v598, %v595
        %v629 = vpack.c.b16 %v602, %v599
        %v630 = vpack.c.b16 %v603, %v600
        %v631 = vpack.c.b16 %v604, %v601
        %v632 = vpack.c.b16 %v608, %v605
        %v633 = vpack.c.b16 %v609, %v606
        %v634 = vpack.c.b16 %v610, %v607
        %659 = vmatpush.bf16.msra.mxu0 %v632
        %660 = vmatpush.bf16.msra.mxu0 %v629
        %661 = vmatpush.bf16.msra.mxu0 %v626
        %662 = vmatpush.bf16.msra.mxu0 %v623
        %663 = vmatpush.bf16.msra.mxu0 %v620
        %664 = vmatpush.bf16.msra.mxu0 %v617
        %665 = vmatpush.bf16.msra.mxu0 %v614
        %666 = vmatpush.bf16.msra.mxu0 %v611
        %667 = vmatmul.bf16.gmra.mxu0 %v498
        %v668 = vpop.f32.mrf.mxu0
        %v669 = vadd.f32 0.0, %v668
        %v670 = vpop.f32.mrf.mxu0
        %v671 = vadd.f32 0.0, %v670
        %672 = vdwg.mxu0
        %673 = vmatpush.bf16.msra.mxu0 %v633
        %674 = vmatpush.bf16.msra.mxu0 %v630
        %675 = vmatpush.bf16.msra.mxu0 %v627
        %676 = vmatpush.bf16.msra.mxu0 %v624
        %677 = vmatpush.bf16.msra.mxu0 %v621
        %678 = vmatpush.bf16.msra.mxu0 %v618
        %679 = vmatpush.bf16.msra.mxu0 %v615
        %680 = vmatpush.bf16.msra.mxu0 %v612
        %681 = vmatmul.bf16.gmra.mxu0 %v498
        %v682 = vpop.f32.mrf.mxu0
        %v683 = vadd.f32 0.0, %v682
        %v684 = vpop.f32.mrf.mxu0
        %v685 = vadd.f32 0.0, %v684
        %686 = vdwg.mxu0
        %687 = vmatpush.bf16.msra.mxu0 %v634
        %688 = vmatpush.bf16.msra.mxu0 %v631
        %689 = vmatpush.bf16.msra.mxu0 %v628
        %690 = vmatpush.bf16.msra.mxu0 %v625
        %691 = vmatpush.bf16.msra.mxu0 %v622
        %692 = vmatpush.bf16.msra.mxu0 %v619
        %693 = vmatpush.bf16.msra.mxu0 %v616
        %694 = vmatpush.bf16.msra.mxu0 %v613
        %695 = vmatmul.bf16.gmra.mxu0 %v498
        %v696 = vpop.f32.mrf.mxu0
        %v697 = vadd.f32 0.0, %v696
        %v698 = vpop.f32.mrf.mxu0
        %v699 = vadd.f32 0.0, %v698
        %700 = vdwg.mxu0
        %v701 = vadd.f32 %v492, %v669
        %v702 = vadd.f32 %v493, %v683
        %v703 = vadd.f32 %v494, %v697
        %v704 = vadd.f32 %v495, %v671
        %v705 = vadd.f32 %v496, %v685
        %v706 = vadd.f32 %v497, %v699
        %707 = vst [vmem:[#allocation2] sm:$0xff] %v701
        %708 = vst [vmem:[#allocation2 + $0x8] sm:$0xff] %v702
        %709 = vst [vmem:[#allocation2 + $0x10] sm:$0xff] %v703
        %710 = vst [vmem:[#allocation2 + $0x18] sm:$0xff] %v704
        %711 = vst [vmem:[#allocation2 + $0x20] sm:$0xff] %v705
        %712 = vst [vmem:[#allocation2 + $0x28] sm:$0xff] %v706
        // Predicated region
        $region71: #{forward.8} parent=61 // pred_check
          %p713 = pneg %p421
        $region72: #{forward.8} parent=61 // pred_check_branch
          %715 = sbr.rel (%p713) target = $region74
        $region73: #{forward.8} parent=61 // pred_region
          %v716 = vld [vmem:[#allocation2] sm:$0xff]
          %v717 = vld [vmem:[#allocation2 + $0x8] sm:$0xff]
          %v718 = vld [vmem:[#allocation2 + $0x10] sm:$0xff]
          %v719 = vld [vmem:[#allocation2 + $0x18] sm:$0xff]
          %v720 = vld [vmem:[#allocation2 + $0x20] sm:$0xff]
          %v721 = vld [vmem:[#allocation2 + $0x28] sm:$0xff]
          %v722 = vld [vmem:[%s411] sm:$0x7]
          %v724 = vperm.slane %v722, 0
          %v725 = vperm.slane %v722, 1
          %v726 = vperm.slane %v722, 2
          %v730 = vadd.f32 %v716, %v724
          %v731 = vadd.f32 %v717, %v725
          %v732 = vadd.f32 %v718, %v726
          %v733 = vadd.f32 %v719, %v724
          %v734 = vadd.f32 %v720, %v725
          %v735 = vadd.f32 %v721, %v726
          %736 = vst [vmem:[%s396] sm:$0xff] %v730
          %737 = vst [vmem:[%s396 + $0x8] sm:$0xff] %v731
          %738 = vst [vmem:[%s396 + $0x10] sm:$0xff] %v732
          %739 = vst [vmem:[%s396 + $0x18] sm:$0xff] %v733
          %740 = vst [vmem:[%s396 + $0x20] sm:$0xff] %v734
          %741 = vst [vmem:[%s396 + $0x28] sm:$0xff] %v735
        $region74: #{forward.8} parent=61 // pred_fallthru
          _
        %s742 = sand.u32 %s179, 1
        %s743 = sand.u32 %s179, 1
        %s744 = smul.addr %s743, 48
        %s745 = scalar_lea.vmem [#allocation4], %s744
        // Predicated region
        $region75: #{forward.8} parent=61 // pred_check
          %p746 = pneg %p189
        $region76: #{forward.8} parent=61 // pred_check_branch
          %748 = sbr.rel (%p746) target = $region78
        $region77: #{forward.8} parent=61 // pred_region
          %s749 = smul.u32 2, %s21
          %s750 = smul.u32 3, %s22
          %s751 = smul.addr %s749, 6
          %s752 = sadd.s32 %s750, %s751
          %s753 = smul.addr %s752, 8
          %s754 = scalar_lea.vmem %s5, %s753
          // Predicated region
          $region79: #{forward.8} parent=77 // pred_check
            _
          $region80: #{forward.8} parent=77 // pred_check_branch
            %756 = sbr.rel (0) target = $region82
          $region81: #{forward.8} parent=77 // pred_region
            // Predicated region
            $region83: #{forward.8} parent=81 // pred_check
              _
            $region84: #{forward.8} parent=81 // pred_check_branch
              %758 = sbr.rel (0) target = $region86
            $region85: #{forward.8} parent=81 // pred_region
              loop: start=0, step=1, limit=1
              $region87: #{forward.8} parent=85 // loop_pre_header
                _
              $region88: #{forward.8} parent=85 // loop_header
                %s760 = sphi 0, %s764
                %p761 = scmp.ge.s32.totalorder %s760, 1
                %s765 = sphi %s745, %s745
                %s766 = sphi %s754, %s754
              $region89: #{forward.8} parent=85 // loop_header_branch
                %763 = sbr.rel (%p761) target = $region93
              $region90: #{forward.8} parent=85 // loop_body
                %v767 = vld [vmem:[%s765] sm:$0xff]
                %768 = vst [vmem:[%s766] sm:$0xff] %v767
                %v769 = vld [vmem:[%s765 + $0x8] sm:$0xff]
                %770 = vst [vmem:[%s766 + $0x8] sm:$0xff] %v769
                %v771 = vld [vmem:[%s765 + $0x10] sm:$0xff]
                %772 = vst [vmem:[%s766 + $0x10] sm:$0xff] %v771
                %v773 = vld [vmem:[%s765 + $0x18] sm:$0xff]
                %774 = vst [vmem:[%s766 + $0x30] sm:$0xff] %v773
                %v775 = vld [vmem:[%s765 + $0x20] sm:$0xff]
                %776 = vst [vmem:[%s766 + $0x38] sm:$0xff] %v775
                %v777 = vld [vmem:[%s765 + $0x28] sm:$0xff]
                %778 = vst [vmem:[%s766 + $0x40] sm:$0xff] %v777
              $region91: #{forward.8} parent=85 // loop_footer
                %s764 = sadd.s32 1, %s760
              $region92: #{forward.8} parent=85 // loop_footer_branch
                %759 = sbr.rel target = $region88
              $region93: #{forward.8} parent=85 // loop_exit
                _
            $region86: #{forward.8} parent=81 // pred_fallthru
              _
            // Predicated region
            $region94: #{forward.8} parent=81 // pred_check
              _
            $region95: #{forward.8} parent=81 // pred_check_branch
              %780 = sbr.rel target = $region97
            $region96: #{forward.8} parent=81 // pred_region
              _
            $region97: #{forward.8} parent=81 // pred_fallthru
              _
          $region82: #{forward.8} parent=77 // pred_fallthru
            _
          %781 = vnop
        $region78: #{forward.8} parent=61 // pred_fallthru
          _
      $region62: #{forward.8} parent=5 // pred_fallthru
        _
      %p782 = scmp.le.s32.totalorder 2, %s11
      // Predicated region
      $region98: #{forward.8} parent=5 // pred_check
        %p783 = pneg %p782
      $region99: #{forward.8} parent=5 // pred_check_branch
        %785 = sbr.rel (%p783) target = $region101
      $region100: #{forward.8} parent=5 // pred_region
        %s786 = ssub.s32 %s11, 2
        // Predicated region
        $region102: #{forward.8} parent=100 // pred_check
          %p787 = pneg %p195
        $region103: #{forward.8} parent=100 // pred_check_branch
          %789 = sbr.rel (%p787) target = $region105
        $region104: #{forward.8} parent=100 // pred_region
          %s790 = sand.u32 %s180, 1
          %s791 = sand.u32 %s180, 1
          %s792 = smul.addr %s791, 48
          %s793 = scalar_lea.vmem [#allocation4], %s792
        $region105: #{forward.8} parent=100 // pred_fallthru
          _
      $region101: #{forward.8} parent=5 // pred_fallthru
        _
    $region6: #{forward.8} parent=1 // loop_footer
      %s15 = sadd.s32 1, %s11
    $region7: #{forward.8} parent=1 // loop_footer_branch
      %10 = sbr.rel target = $region3
    $region8: #{forward.8} parent=1 // loop_exit
      _

// kernel: forward.10
$region0: #{forward.10}
  #allocation0 [shape = 'u32[]', space=smem, size = 0x4, offset = 0x4, fixed_abs, tag = 'smem constant byte address 0x4 - core index']
  #allocation1 [shape = 'u32[72,128]{1,0:T(1,128)}', space=vmem, size = 0x9000, scoped, tag = 'internal scratch']
  #allocation2 [shape = 'f32[16,128]{1,0:T(8,128)}', space=vmem, size = 0x2000, scoped, tag = 'scratch operand']
  %s0 = inlined_call_operand.vmem [shape: f32[16,256], index: 0, kind: input, shape index: {}]
  %s1 = inlined_call_operand.vmem [shape: bf16[256,128], index: 1, kind: input, shape index: {}]
  %s2 = inlined_call_operand.vmem [shape: f32[1,128], index: 2, kind: input, shape index: {}]
  %s3 = inlined_call_operand.vmem [shape: f32[16,128], index: 3, kind: input, shape index: {}]
  %s4 = inlined_call_operand.vmem [shape: f32[16,128], index: 4, kind: output, shape index: {}]
  %s5 = sld [smem:[#allocation0]]
  $region34: #{forward.10} parent=0
    _
  %s7 = ssub.s32 1, %s5
  %s8 = scalar_select 0, %s7, %s5
  // Predicated region
  $region2: #{forward.10} parent=0 // pred_check
    _
  $region3: #{forward.10} parent=0 // pred_check_branch
    %10 = sbr.rel (0) target = $region5
  $region4: #{forward.10} parent=0 // pred_region
    _
  $region5: #{forward.10} parent=0 // pred_fallthru
    _
  // Predicated region
  $region6: #{forward.10} parent=0 // pred_check
    _
  $region7: #{forward.10} parent=0 // pred_check_branch
    %12 = sbr.rel (0) target = $region9
  $region8: #{forward.10} parent=0 // pred_region
    _
  $region9: #{forward.10} parent=0 // pred_fallthru
    _
  // Predicated region
  $region10: #{forward.10} parent=0 // pred_check
    _
  $region11: #{forward.10} parent=0 // pred_check_branch
    %14 = sbr.rel (0) target = $region13
  $region12: #{forward.10} parent=0 // pred_region
    _
  $region13: #{forward.10} parent=0 // pred_fallthru
    _
  // Predicated region
  $region14: #{forward.10} parent=0 // pred_check
    _
  $region15: #{forward.10} parent=0 // pred_check_branch
    %16 = sbr.rel (0) target = $region17
  $region16: #{forward.10} parent=0 // pred_region
    _
  $region17: #{forward.10} parent=0 // pred_fallthru
    _
  %p17 = scmp.eq.s32.totalorder 0, 0
  // Predicated region
  $region18: #{forward.10} parent=0 // pred_check
    %p18 = pneg %p17
  $region19: #{forward.10} parent=0 // pred_check_branch
    %20 = sbr.rel (%p18) target = $region21
  $region20: #{forward.10} parent=0 // pred_region
    %21 = vst [vmem:[#allocation2] sm:$0xff] 0.0
    %22 = vst [vmem:[#allocation2 + $0x8] sm:$0xff] 0.0
  $region21: #{forward.10} parent=0 // pred_fallthru
    _
  %v23 = vld [vmem:[%s0] sm:$0xff]
  %v24 = vld [vmem:[%s0 + $0x8] sm:$0xff]
  %v25 = vld [vmem:[%s0 + $0x10] sm:$0xff]
  %v26 = vld [vmem:[%s0 + $0x18] sm:$0xff]
  %v27 = vld [vmem:[#allocation2] sm:$0xff]
  %v28 = vld [vmem:[#allocation2 + $0x8] sm:$0xff]
  %v29 = vpack.c.bf16 %v25, %v23
  %v30 = vpack.c.bf16 %v26, %v24
  %v31 = vld [vmem:[%s1] sm:$0xf]
  %v32 = vld [vmem:[%s1 + $0x4] sm:$0xf]
  %v33 = vld [vmem:[%s1 + $0x8] sm:$0xf]
  %v34 = vld [vmem:[%s1 + $0xc] sm:$0xf]
  %v35 = vld [vmem:[%s1 + $0x10] sm:$0xf]
  %v36 = vld [vmem:[%s1 + $0x14] sm:$0xf]
  %v37 = vld [vmem:[%s1 + $0x18] sm:$0xf]
  %v38 = vld [vmem:[%s1 + $0x1c] sm:$0xf]
  %v39 = vld [vmem:[%s1 + $0x20] sm:$0xf]
  %v40 = vld [vmem:[%s1 + $0x24] sm:$0xf]
  %v41 = vld [vmem:[%s1 + $0x28] sm:$0xf]
  %v42 = vld [vmem:[%s1 + $0x2c] sm:$0xf]
  %v43 = vld [vmem:[%s1 + $0x30] sm:$0xf]
  %v44 = vld [vmem:[%s1 + $0x34] sm:$0xf]
  %v45 = vld [vmem:[%s1 + $0x38] sm:$0xf]
  %v46 = vld [vmem:[%s1 + $0x3c] sm:$0xf]
  %v47 = vld [vmem:[%s1 + $0x40] sm:$0xf]
  %v48 = vld [vmem:[%s1 + $0x44] sm:$0xf]
  %v49 = vld [vmem:[%s1 + $0x48] sm:$0xf]
  %v50 = vld [vmem:[%s1 + $0x4c] sm:$0xf]
  %v51 = vld [vmem:[%s1 + $0x50] sm:$0xf]
  %v52 = vld [vmem:[%s1 + $0x54] sm:$0xf]
  %v53 = vld [vmem:[%s1 + $0x58] sm:$0xf]
  %v54 = vld [vmem:[%s1 + $0x5c] sm:$0xf]
  %v55 = vld [vmem:[%s1 + $0x60] sm:$0xf]
  %v56 = vld [vmem:[%s1 + $0x64] sm:$0xf]
  %v57 = vld [vmem:[%s1 + $0x68] sm:$0xf]
  %v58 = vld [vmem:[%s1 + $0x6c] sm:$0xf]
  %v59 = vld [vmem:[%s1 + $0x70] sm:$0xf]
  %v60 = vld [vmem:[%s1 + $0x74] sm:$0xf]
  %v61 = vld [vmem:[%s1 + $0x78] sm:$0xf]
  %v62 = vld [vmem:[%s1 + $0x7c] sm:$0xf]
  %v95 = vunpack.c.l.b16 %v31
  %v96 = vunpack.c.l.b16 %v32
  %v97 = vunpack.c.l.b16 %v33
  %v98 = vunpack.c.l.b16 %v34
  %v99 = vunpack.c.l.b16 %v35
  %v100 = vunpack.c.l.b16 %v36
  %v101 = vunpack.c.l.b16 %v37
  %v102 = vunpack.c.l.b16 %v38
  %v103 = vunpack.c.l.b16 %v39
  %v104 = vunpack.c.l.b16 %v40
  %v105 = vunpack.c.l.b16 %v41
  %v106 = vunpack.c.l.b16 %v42
  %v107 = vunpack.c.l.b16 %v43
  %v108 = vunpack.c.l.b16 %v44
  %v109 = vunpack.c.l.b16 %v45
  %v110 = vunpack.c.l.b16 %v46
  %v111 = vunpack.c.l.b16 %v47
  %v112 = vunpack.c.l.b16 %v48
  %v113 = vunpack.c.l.b16 %v49
  %v114 = vunpack.c.l.b16 %v50
  %v115 = vunpack.c.l.b16 %v51
  %v116 = vunpack.c.l.b16 %v52
  %v117 = vunpack.c.l.b16 %v53
  %v118 = vunpack.c.l.b16 %v54
  %v119 = vunpack.c.l.b16 %v55
  %v120 = vunpack.c.l.b16 %v56
  %v121 = vunpack.c.l.b16 %v57
  %v122 = vunpack.c.l.b16 %v58
  %v123 = vunpack.c.l.b16 %v59
  %v124 = vunpack.c.l.b16 %v60
  %v125 = vunpack.c.l.b16 %v61
  %v126 = vunpack.c.l.b16 %v62
  %v127 = vpack.c.b16 %v96, %v95
  %v128 = vpack.c.b16 %v98, %v97
  %v129 = vpack.c.b16 %v100, %v99
  %v130 = vpack.c.b16 %v102, %v101
  %v131 = vpack.c.b16 %v104, %v103
  %v132 = vpack.c.b16 %v106, %v105
  %v133 = vpack.c.b16 %v108, %v107
  %v134 = vpack.c.b16 %v110, %v109
  %v135 = vpack.c.b16 %v112, %v111
  %v136 = vpack.c.b16 %v114, %v113
  %v137 = vpack.c.b16 %v116, %v115
  %v138 = vpack.c.b16 %v118, %v117
  %v139 = vpack.c.b16 %v120, %v119
  %v140 = vpack.c.b16 %v122, %v121
  %v141 = vpack.c.b16 %v124, %v123
  %v142 = vpack.c.b16 %v126, %v125
  %159 = vmatpush.bf16.msra.mxu0 %v134
  %160 = vmatpush.bf16.msra.mxu0 %v133
  %161 = vmatpush.bf16.msra.mxu0 %v132
  %162 = vmatpush.bf16.msra.mxu0 %v131
  %163 = vmatpush.bf16.msra.mxu0 %v130
  %164 = vmatpush.bf16.msra.mxu0 %v129
  %165 = vmatpush.bf16.msra.mxu0 %v128
  %166 = vmatpush.bf16.msra.mxu0 %v127
  %167 = vmatmul.bf16.gmra.mxu0 %v29
  %v168 = vpop.f32.mrf.mxu0
  %v169 = vadd.f32 0.0, %v168
  %v170 = vpop.f32.mrf.mxu0
  %v171 = vadd.f32 0.0, %v170
  %172 = vdwg.mxu0
  %173 = vmatpush.bf16.msra.mxu0 %v142
  %174 = vmatpush.bf16.msra.mxu0 %v141
  %175 = vmatpush.bf16.msra.mxu0 %v140
  %176 = vmatpush.bf16.msra.mxu0 %v139
  %177 = vmatpush.bf16.msra.mxu0 %v138
  %178 = vmatpush.bf16.msra.mxu0 %v137
  %179 = vmatpush.bf16.msra.mxu0 %v136
  %180 = vmatpush.bf16.msra.mxu0 %v135
  %181 = vmatmul.bf16.gmra.mxu0 %v30
  %v182 = vpop.f32.mrf.mxu0
  %v183 = vadd.f32 %v169, %v182
  %v184 = vpop.f32.mrf.mxu0
  %v185 = vadd.f32 %v171, %v184
  %186 = vdwg.mxu0
  %v187 = vadd.f32 %v27, %v183
  %v188 = vadd.f32 %v28, %v185
  %189 = vst [vmem:[#allocation2] sm:$0xff] %v187
  %190 = vst [vmem:[#allocation2 + $0x8] sm:$0xff] %v188
  // Predicated region
  $region22: #{forward.10} parent=0 // pred_check
    %p191 = pneg %p17
  $region23: #{forward.10} parent=0 // pred_check_branch
    %193 = sbr.rel (%p191) target = $region25
  $region24: #{forward.10} parent=0 // pred_region
    %v194 = vld [vmem:[#allocation2] sm:$0xff]
    %v195 = vld [vmem:[#allocation2 + $0x8] sm:$0xff]
    %v196 = vld [vmem:[%s2] sm:$0x1]
    %v198 = vperm.slane %v196, 0
    %v200 = vadd.f32 %v194, %v198
    %v201 = vadd.f32 %v195, %v198
    %v202 = vld [vmem:[%s3] sm:$0xff]
    %v203 = vld [vmem:[%s3 + $0x8] sm:$0xff]
    %v204 = vadd.f32 %v200, %v202
    %v205 = vadd.f32 %v201, %v203
    %206 = vst [vmem:[%s4] sm:$0xff] %v204
    %207 = vst [vmem:[%s4 + $0x8] sm:$0xff] %v205
  $region25: #{forward.10} parent=0 // pred_fallthru
    _
  // Predicated region
  $region26: #{forward.10} parent=0 // pred_check
    _
  $region27: #{forward.10} parent=0 // pred_check_branch
    %209 = sbr.rel (0) target = $region29
  $region28: #{forward.10} parent=0 // pred_region
    _
  $region29: #{forward.10} parent=0 // pred_fallthru
    _
  // Predicated region
  $region30: #{forward.10} parent=0 // pred_check
    _
  $region31: #{forward.10} parent=0 // pred_check_branch
    %211 = sbr.rel (0) target = $region33
  $region32: #{forward.10} parent=0 // pred_region
    _
  $region33: #{forward.10} parent=0 // pred_fallthru
    _

// kernel: forward.9
$region0: #{forward.9}
  #allocation0 [shape = 'u32[]', space=smem, size = 0x4, offset = 0x4, fixed_abs, tag = 'smem constant byte address 0x4 - core index']
  #allocation1 [shape = 'u32[72,128]{1,0:T(1,128)}', space=vmem, size = 0x9000, scoped, tag = 'internal scratch']
  %s0 = inlined_call_operand.vmem [shape: f32[2,8,768], index: 0, kind: input, shape index: {}]
  %s1 = inlined_call_operand.vmem [shape: f32[2,8,256], index: 1, kind: output, shape index: {}]
  %s2 = sld [smem:[#allocation0]]
  $region37: #{forward.9} parent=0
    _
  %s4 = ssub.s32 1, %s2
  %s5 = scalar_select 0, %s4, %s2
  loop: start=0, step=1, limit=4
  $region2: #{forward.9} parent=0 // loop_pre_header
    _
  $region3: #{forward.9} parent=0 // loop_header
    %s7 = sphi 0, %s11
    %p8 = scmp.ge.s32.totalorder %s7, 4
    %s17 = sphi 0, %s19
    %s20 = sphi 0, %s17
    %s21 = sphi 0, %s20
    %s37 = sphi 0, %s21
    %s43 = sphi 0, %s45
    %s46 = sphi 0, %s43
    %s47 = sphi 0, %s46
    %s63 = sphi 0, %s47
  $region4: #{forward.9} parent=0 // loop_header_branch
    %10 = sbr.rel (%p8) target = $region8
  $region5: #{forward.9} parent=0 // loop_body
    %s12 = ssub.s32 %s7, 1
    %s13 = ssub.s32 %s7, 2
    %s14 = sadd.s32 %s7, 1
    %s15 = ssub.s32 %s7, %s14
    %p16 = scmp.eq.s32.totalorder %s15, 0
    %s18 = sadd.s32 %s17, 1
    %s19 = scalar_select %p16, %s17, %s18
    %p22 = pneg %p16
    %p23 = scmp.eq.s32.totalorder %s7, 1
    %p24 = por %p22, %p23
    %p25 = scmp.ne.s32.totalorder %s17, %s20
    %p26 = scmp.eq.s32.totalorder %s7, 0
    %p27 = por %p25, %p26
    %p28 = scmp.ne.s32.totalorder %s17, %s20
    %p29 = scmp.eq.s32.totalorder %s12, 1
    %p30 = por %p28, %p29
    %p31 = scmp.ne.s32.totalorder %s20, %s21
    %p32 = scmp.eq.s32.totalorder %s12, 0
    %p33 = por %p31, %p32
    %p34 = scmp.ne.s32.totalorder %s20, %s21
    %p35 = scmp.eq.s32.totalorder %s13, 1
    %p36 = por %p34, %p35
    %p38 = scmp.ne.s32.totalorder %s21, %s37
    %p39 = scmp.eq.s32.totalorder %s13, 0
    %p40 = por %p38, %p39
    %s41 = ssub.s32 %s7, %s14
    %p42 = scmp.eq.s32.totalorder %s41, 0
    %s44 = sadd.s32 %s43, 1
    %s45 = scalar_select %p42, %s43, %s44
    %p48 = pneg %p42
    %p49 = scmp.eq.s32.totalorder %s7, 1
    %p50 = por %p48, %p49
    %p51 = scmp.ne.s32.totalorder %s43, %s46
    %p52 = scmp.eq.s32.totalorder %s7, 0
    %p53 = por %p51, %p52
    %p54 = scmp.ne.s32.totalorder %s43, %s46
    %p55 = scmp.eq.s32.totalorder %s12, 1
    %p56 = por %p54, %p55
    %p57 = scmp.ne.s32.totalorder %s46, %s47
    %p58 = scmp.eq.s32.totalorder %s12, 0
    %p59 = por %p57, %p58
    %p60 = scmp.ne.s32.totalorder %s46, %s47
    %p61 = scmp.eq.s32.totalorder %s13, 1
    %p62 = por %p60, %p61
    %p64 = scmp.ne.s32.totalorder %s47, %s63
    %p65 = scmp.eq.s32.totalorder %s13, 0
    %p66 = por %p64, %p65
    %p67 = scmp.le.s32.totalorder 1, %s7
    %p68 = scmp.lt.s32.totalorder %s7, 3
    %p69 = pnand %p67, %p68
    %p70 = pneg %p69
    // Predicated region
    $region9: #{forward.9} parent=5 // pred_check
      _
    $region10: #{forward.9} parent=5 // pred_check_branch
      %72 = sbr.rel (%p69) target = $region12
    $region11: #{forward.9} parent=5 // pred_region
      %s73 = ssub.s32 %s7, 1
    $region12: #{forward.9} parent=5 // pred_fallthru
      _
    %p74 = scmp.lt.s32.totalorder %s7, 2
    // Predicated region
    $region13: #{forward.9} parent=5 // pred_check
      %p75 = pneg %p74
    $region14: #{forward.9} parent=5 // pred_check_branch
      %77 = sbr.rel (%p75) target = $region16
    $region15: #{forward.9} parent=5 // pred_region
      // Predicated region
      $region17: #{forward.9} parent=15 // pred_check
        %p78 = pneg %p27
      $region18: #{forward.9} parent=15 // pred_check_branch
        %80 = sbr.rel (%p78) target = $region20
      $region19: #{forward.9} parent=15 // pred_region
        %p81 = scmp.lt.s32.totalorder %s7, 1
        %s82 = scalar_select %p81, %s7, 1
        %s83 = smul.addr %s82, 6
        %s84 = smul.addr %s83, 8
        %s85 = scalar_lea.vmem %s0, %s84
      $region20: #{forward.9} parent=15 // pred_fallthru
        _
    $region16: #{forward.9} parent=5 // pred_fallthru
      _
    %p86 = scmp.le.s32.totalorder 1, %s7
    %p87 = scmp.lt.s32.totalorder %s7, 3
    %p88 = pnand %p86, %p87
    %p89 = pneg %p88
    // Predicated region
    $region21: #{forward.9} parent=5 // pred_check
      _
    $region22: #{forward.9} parent=5 // pred_check_branch
      %91 = sbr.rel (%p88) target = $region24
    $region23: #{forward.9} parent=5 // pred_region
      %s92 = ssub.s32 %s7, 1
      %p93 = scmp.lt.s32.totalorder %s12, 1
      %s94 = scalar_select %p93, %s12, 1
      %s95 = smul.addr %s94, 6
      %s96 = smul.addr %s95, 8
      %s97 = scalar_lea.vmem %s0, %s96
      %p98 = pneg %p33
      %p99 = pneg %p30
      %p100 = pneg %p59
      %p101 = pneg %p56
      %p102 = scmp.lt.s32.totalorder %s12, 1
      %s103 = scalar_select %p102, %s12, 1
      %s104 = smul.addr %s103, 2
      %s105 = smul.addr %s104, 8
      %s106 = scalar_lea.vmem %s1, %s105
      %p107 = scmp.lt.s32.totalorder %s12, 1
      %s108 = scalar_select %p107, %s12, 1
      %s109 = smul.addr %s108, 6
      %s110 = smul.addr %s109, 8
      %s111 = scalar_lea.vmem %s0, %s110
      %p112 = scmp.lt.s32.totalorder %s12, 1
      %s113 = scalar_select %p112, %s12, 1
      %s114 = smul.addr %s113, 2
      %s115 = smul.addr %s114, 8
      %s116 = scalar_lea.vmem %s1, %s115
      %v118 = vlaneseq
      %v119 = vand.u32 %v118, 127
      %vm120 = vcmp.lt.s32.totalorder %v119, 5
      %v121 = vld [vmem:[%s111] sm:$0xff]
      %v122 = vpack.c.bf16 %v121, %v121
      %v123 = vld [vmem:[%s111 + $0x10] sm:$0xff]
      %v124 = vpack.c.bf16 %v123, %v123
      %v125 = vld [vmem:[%s111 + $0x20] sm:$0xff]
      %v126 = vpack.c.bf16 %v125, %v125
      %127 = vmatpush.bf16.xpose.msra.mxu0 0
      %128 = vmatpush.bf16.xpose.msra.mxu0 0
      %129 = vmatpush.bf16.xpose.msra.mxu0 0
      %130 = vmatpush.bf16.xpose.msra.mxu0 0
      %131 = vmatpush.bf16.xpose.msra.mxu0 0
      %132 = vmatpush.bf16.xpose.msra.mxu0 0
      %133 = vmatpush.bf16.xpose.msra.mxu0 0
      %134 = vmatpush.bf16.xpose.msra.mxu0 %v124
      %135 = vmatmul.bf16.gmra.mxu0 %v122
      %v136 = vpop.f32.mrf.mxu0
      %v137 = vadd.f32 0.0, %v136
      %v138 = vpop.f32.mrf.mxu0
      %139 = vdwg.mxu0
      %v140 = vsel %vm120, %v137, -1e+30
      %vm141 = vcmask 64512
      %v142 = vsel %vm141, %v140, -inf
      %143 = vmax.xlane.f32.xlu0 %v142
      %v144 = vpop.xlane.xlu0 %143
      %v145 = vsub.f32 %v140, %v144
      %v146 = vmul.f32 %v145, 1.442695
      %v147 = vpow.pop %v146
      %v148 = vsel %vm141, %v147, 0.0
      %149 = vadd.xlane.f32.xlu0 %v148
      %v150 = vpop.xlane.xlu0 %149
      %v151 = vrcp.pop %v150
      %v152 = vmul.f32 %v147, %v151
      %v153 = vpack.c.bf16 %v152, %v152
      %v155 = vsel %vm141, %v153, 0
      %vm157 = vcmask 1043456
      %v159 = vsel %vm157, %v126, 0
      %161 = vmatpush.bf16.msra.mxu0 0
      %162 = vmatpush.bf16.msra.mxu0 0
      %163 = vmatpush.bf16.msra.mxu0 0
      %164 = vmatpush.bf16.msra.mxu0 0
      %165 = vmatpush.bf16.msra.mxu0 0
      %166 = vmatpush.bf16.msra.mxu0 0
      %167 = vmatpush.bf16.msra.mxu0 0
      %168 = vmatpush.bf16.msra.mxu0 %v159
      %169 = vmatmul.bf16.gmra.mxu0 %v155
      %v170 = vpop.f32.mrf.mxu0
      %v171 = vadd.f32 0.0, %v170
      %v172 = vpop.f32.mrf.mxu0
      %173 = vdwg.mxu0
      %174 = vst [vmem:[%s116] sm:$0xff] %v171
      %v175 = vld [vmem:[%s111 + $0x8] sm:$0xff]
      %v176 = vpack.c.bf16 %v175, %v175
      %v177 = vld [vmem:[%s111 + $0x18] sm:$0xff]
      %v178 = vpack.c.bf16 %v177, %v177
      %v179 = vld [vmem:[%s111 + $0x28] sm:$0xff]
      %v180 = vpack.c.bf16 %v179, %v179
      %181 = vmatpush.bf16.xpose.msra.mxu0 0
      %182 = vmatpush.bf16.xpose.msra.mxu0 0
      %183 = vmatpush.bf16.xpose.msra.mxu0 0
      %184 = vmatpush.bf16.xpose.msra.mxu0 0
      %185 = vmatpush.bf16.xpose.msra.mxu0 0
      %186 = vmatpush.bf16.xpose.msra.mxu0 0
      %187 = vmatpush.bf16.xpose.msra.mxu0 0
      %188 = vmatpush.bf16.xpose.msra.mxu0 %v178
      %189 = vmatmul.bf16.gmra.mxu0 %v176
      %v190 = vpop.f32.mrf.mxu0
      %v191 = vadd.f32 0.0, %v190
      %v192 = vpop.f32.mrf.mxu0
      %193 = vdwg.mxu0
      %v194 = vsel %vm120, %v191, -1e+30
      %v195 = vsel %vm141, %v194, -inf
      %196 = vmax.xlane.f32.xlu0 %v195
      %v197 = vpop.xlane.xlu0 %196
      %v198 = vsub.f32 %v194, %v197
      %v199 = vmul.f32 %v198, 1.442695
      %v200 = vpow.pop %v199
      %v201 = vsel %vm141, %v200, 0.0
      %202 = vadd.xlane.f32.xlu0 %v201
      %v203 = vpop.xlane.xlu0 %202
      %v204 = vrcp.pop %v203
      %v205 = vmul.f32 %v200, %v204
      %v206 = vpack.c.bf16 %v205, %v205
      %v208 = vsel %vm141, %v206, 0
      %v211 = vsel %vm157, %v180, 0
      %213 = vmatpush.bf16.msra.mxu0 0
      %214 = vmatpush.bf16.msra.mxu0 0
      %215 = vmatpush.bf16.msra.mxu0 0
      %216 = vmatpush.bf16.msra.mxu0 0
      %217 = vmatpush.bf16.msra.mxu0 0
      %218 = vmatpush.bf16.msra.mxu0 0
      %219 = vmatpush.bf16.msra.mxu0 0
      %220 = vmatpush.bf16.msra.mxu0 %v211
      %221 = vmatmul.bf16.gmra.mxu0 %v208
      %v222 = vpop.f32.mrf.mxu0
      %v223 = vadd.f32 0.0, %v222
      %v224 = vpop.f32.mrf.mxu0
      %225 = vdwg.mxu0
      %226 = vst [vmem:[%s116 + $0x8] sm:$0xff] %v223
      %p227 = scmp.lt.s32.totalorder %s12, 1
      %s228 = scalar_select %p227, %s12, 1
      %s229 = smul.addr %s228, 2
      %s230 = smul.addr %s229, 8
      %s231 = scalar_lea.vmem %s1, %s230
      // Predicated region
      $region25: #{forward.9} parent=23 // pred_check
        %p232 = pneg %p56
      $region26: #{forward.9} parent=23 // pred_check_branch
        %234 = sbr.rel (%p232) target = $region28
      $region27: #{forward.9} parent=23 // pred_region
        _
      $region28: #{forward.9} parent=23 // pred_fallthru
        _
    $region24: #{forward.9} parent=5 // pred_fallthru
      _
    %p235 = scmp.le.s32.totalorder 2, %s7
    // Predicated region
    $region29: #{forward.9} parent=5 // pred_check
      %p236 = pneg %p235
    $region30: #{forward.9} parent=5 // pred_check_branch
      %238 = sbr.rel (%p236) target = $region32
    $region31: #{forward.9} parent=5 // pred_region
      %s239 = ssub.s32 %s7, 2
      // Predicated region
      $region33: #{forward.9} parent=31 // pred_check
        %p240 = pneg %p62
      $region34: #{forward.9} parent=31 // pred_check_branch
        %242 = sbr.rel (%p240) target = $region36
      $region35: #{forward.9} parent=31 // pred_region
        %p243 = scmp.lt.s32.totalorder %s13, 1
        %s244 = scalar_select %p243, %s13, 1
        %s245 = smul.addr %s244, 2
        %s246 = smul.addr %s245, 8
        %s247 = scalar_lea.vmem %s1, %s246
      $region36: #{forward.9} parent=31 // pred_fallthru
        _
    $region32: #{forward.9} parent=5 // pred_fallthru
      _
  $region6: #{forward.9} parent=0 // loop_footer
    %s11 = sadd.s32 1, %s7
  $region7: #{forward.9} parent=0 // loop_footer_branch
    %6 = sbr.rel target = $region3
  $region8: #{forward.9} parent=0 // loop_exit
    _

// kernel: forward.12
$region0: #{forward.12}
  #allocation0 [shape = 'u32[]', space=smem, size = 0x4, offset = 0x4, fixed_abs, tag = 'smem constant byte address 0x4 - core index']
  #allocation1 [shape = 'u32[72,128]{1,0:T(1,128)}', space=vmem, size = 0x9000, scoped, tag = 'internal scratch']
  #allocation2 [shape = 'f32[16,128]{1,0:T(8,128)}', space=vmem, size = 0x2000, scoped, tag = 'scratch operand']
  %s0 = inlined_call_operand.vmem [shape: f32[16,128], index: 0, kind: input, shape index: {}]
  %s1 = inlined_call_operand.vmem [shape: bf16[128,128], index: 1, kind: input, shape index: {}]
  %s2 = inlined_call_operand.vmem [shape: f32[1,128], index: 2, kind: input, shape index: {}]
  %s3 = inlined_call_operand.vmem [shape: f32[16,128], index: 3, kind: input, shape index: {}]
  %s4 = inlined_call_operand.vmem [shape: f32[16,128], index: 4, kind: output, shape index: {}]
  %s5 = sld [smem:[#allocation0]]
  $region34: #{forward.12} parent=0
    _
  %s7 = ssub.s32 1, %s5
  %s8 = scalar_select 0, %s7, %s5
  // Predicated region
  $region2: #{forward.12} parent=0 // pred_check
    _
  $region3: #{forward.12} parent=0 // pred_check_branch
    %10 = sbr.rel (0) target = $region5
  $region4: #{forward.12} parent=0 // pred_region
    _
  $region5: #{forward.12} parent=0 // pred_fallthru
    _
  // Predicated region
  $region6: #{forward.12} parent=0 // pred_check
    _
  $region7: #{forward.12} parent=0 // pred_check_branch
    %12 = sbr.rel (0) target = $region9
  $region8: #{forward.12} parent=0 // pred_region
    _
  $region9: #{forward.12} parent=0 // pred_fallthru
    _
  // Predicated region
  $region10: #{forward.12} parent=0 // pred_check
    _
  $region11: #{forward.12} parent=0 // pred_check_branch
    %14 = sbr.rel (0) target = $region13
  $region12: #{forward.12} parent=0 // pred_region
    _
  $region13: #{forward.12} parent=0 // pred_fallthru
    _
  // Predicated region
  $region14: #{forward.12} parent=0 // pred_check
    _
  $region15: #{forward.12} parent=0 // pred_check_branch
    %16 = sbr.rel (0) target = $region17
  $region16: #{forward.12} parent=0 // pred_region
    _
  $region17: #{forward.12} parent=0 // pred_fallthru
    _
  %p17 = scmp.eq.s32.totalorder 0, 0
  // Predicated region
  $region18: #{forward.12} parent=0 // pred_check
    %p18 = pneg %p17
  $region19: #{forward.12} parent=0 // pred_check_branch
    %20 = sbr.rel (%p18) target = $region21
  $region20: #{forward.12} parent=0 // pred_region
    %21 = vst [vmem:[#allocation2] sm:$0xff] 0.0
    %22 = vst [vmem:[#allocation2 + $0x8] sm:$0xff] 0.0
  $region21: #{forward.12} parent=0 // pred_fallthru
    _
  %v23 = vld [vmem:[%s0] sm:$0xff]
  %v24 = vld [vmem:[%s0 + $0x8] sm:$0xff]
  %v25 = vld [vmem:[#allocation2] sm:$0xff]
  %v26 = vld [vmem:[#allocation2 + $0x8] sm:$0xff]
  %v27 = vpack.c.bf16 %v24, %v23
  %v28 = vld [vmem:[%s1] sm:$0xf]
  %v29 = vld [vmem:[%s1 + $0x4] sm:$0xf]
  %v30 = vld [vmem:[%s1 + $0x8] sm:$0xf]
  %v31 = vld [vmem:[%s1 + $0xc] sm:$0xf]
  %v32 = vld [vmem:[%s1 + $0x10] sm:$0xf]
  %v33 = vld [vmem:[%s1 + $0x14] sm:$0xf]
  %v34 = vld [vmem:[%s1 + $0x18] sm:$0xf]
  %v35 = vld [vmem:[%s1 + $0x1c] sm:$0xf]
  %v36 = vld [vmem:[%s1 + $0x20] sm:$0xf]
  %v37 = vld [vmem:[%s1 + $0x24] sm:$0xf]
  %v38 = vld [vmem:[%s1 + $0x28] sm:$0xf]
  %v39 = vld [vmem:[%s1 + $0x2c] sm:$0xf]
  %v40 = vld [vmem:[%s1 + $0x30] sm:$0xf]
  %v41 = vld [vmem:[%s1 + $0x34] sm:$0xf]
  %v42 = vld [vmem:[%s1 + $0x38] sm:$0xf]
  %v43 = vld [vmem:[%s1 + $0x3c] sm:$0xf]
  %v60 = vunpack.c.l.b16 %v28
  %v61 = vunpack.c.l.b16 %v29
  %v62 = vunpack.c.l.b16 %v30
  %v63 = vunpack.c.l.b16 %v31
  %v64 = vunpack.c.l.b16 %v32
  %v65 = vunpack.c.l.b16 %v33
  %v66 = vunpack.c.l.b16 %v34
  %v67 = vunpack.c.l.b16 %v35
  %v68 = vunpack.c.l.b16 %v36
  %v69 = vunpack.c.l.b16 %v37
  %v70 = vunpack.c.l.b16 %v38
  %v71 = vunpack.c.l.b16 %v39
  %v72 = vunpack.c.l.b16 %v40
  %v73 = vunpack.c.l.b16 %v41
  %v74 = vunpack.c.l.b16 %v42
  %v75 = vunpack.c.l.b16 %v43
  %v76 = vpack.c.b16 %v61, %v60
  %v77 = vpack.c.b16 %v63, %v62
  %v78 = vpack.c.b16 %v65, %v64
  %v79 = vpack.c.b16 %v67, %v66
  %v80 = vpack.c.b16 %v69, %v68
  %v81 = vpack.c.b16 %v71, %v70
  %v82 = vpack.c.b16 %v73, %v72
  %v83 = vpack.c.b16 %v75, %v74
  %92 = vmatpush.bf16.msra.mxu0 %v83
  %93 = vmatpush.bf16.msra.mxu0 %v82
  %94 = vmatpush.bf16.msra.mxu0 %v81
  %95 = vmatpush.bf16.msra.mxu0 %v80
  %96 = vmatpush.bf16.msra.mxu0 %v79
  %97 = vmatpush.bf16.msra.mxu0 %v78
  %98 = vmatpush.bf16.msra.mxu0 %v77
  %99 = vmatpush.bf16.msra.mxu0 %v76
  %100 = vmatmul.bf16.gmra.mxu0 %v27
  %v101 = vpop.f32.mrf.mxu0
  %v102 = vadd.f32 0.0, %v101
  %v103 = vpop.f32.mrf.mxu0
  %v104 = vadd.f32 0.0, %v103
  %105 = vdwg.mxu0
  %v106 = vadd.f32 %v25, %v102
  %v107 = vadd.f32 %v26, %v104
  %108 = vst [vmem:[#allocation2] sm:$0xff] %v106
  %109 = vst [vmem:[#allocation2 + $0x8] sm:$0xff] %v107
  // Predicated region
  $region22: #{forward.12} parent=0 // pred_check
    %p110 = pneg %p17
  $region23: #{forward.12} parent=0 // pred_check_branch
    %112 = sbr.rel (%p110) target = $region25
  $region24: #{forward.12} parent=0 // pred_region
    %v113 = vld [vmem:[#allocation2] sm:$0xff]
    %v114 = vld [vmem:[#allocation2 + $0x8] sm:$0xff]
    %v115 = vld [vmem:[%s2] sm:$0x1]
    %v117 = vperm.slane %v115, 0
    %v119 = vadd.f32 %v113, %v117
    %v120 = vadd.f32 %v114, %v117
    %v121 = vld [vmem:[%s3] sm:$0xff]
    %v122 = vld [vmem:[%s3 + $0x8] sm:$0xff]
    %v123 = vadd.f32 %v119, %v121
    %v124 = vadd.f32 %v120, %v122
    %125 = vst [vmem:[%s4] sm:$0xff] %v123
    %126 = vst [vmem:[%s4 + $0x8] sm:$0xff] %v124
  $region25: #{forward.12} parent=0 // pred_fallthru
    _
  // Predicated region
  $region26: #{forward.12} parent=0 // pred_check
    _
  $region27: #{forward.12} parent=0 // pred_check_branch
    %128 = sbr.rel (0) target = $region29
  $region28: #{forward.12} parent=0 // pred_region
    _
  $region29: #{forward.12} parent=0 // pred_fallthru
    _
  // Predicated region
  $region30: #{forward.12} parent=0 // pred_check
    _
  $region31: #{forward.12} parent=0 // pred_check_branch
    %130 = sbr.rel (0) target = $region33
  $region32: #{forward.12} parent=0 // pred_region
    _
  $region33: #{forward.12} parent=0 // pred_fallthru
    _

// kernel: forward.11
$region0: #{forward.11}
  #allocation0 [shape = 'u32[]', space=smem, size = 0x4, offset = 0x4, fixed_abs, tag = 'smem constant byte address 0x4 - core index']
  #allocation1 [shape = 'u32[72,128]{1,0:T(1,128)}', space=vmem, size = 0x9000, scoped, tag = 'internal scratch']
  #allocation2 [shape = 'f32[16,128]{1,0:T(8,128)}', space=vmem, size = 0x2000, scoped, tag = 'scratch operand']
  %s0 = inlined_call_operand.vmem [shape: f32[16,128], index: 0, kind: input, shape index: {}]
  %s1 = inlined_call_operand.vmem [shape: bf16[128,128], index: 1, kind: input, shape index: {}]
  %s2 = inlined_call_operand.vmem [shape: f32[1,128], index: 2, kind: input, shape index: {}]
  %s3 = inlined_call_operand.vmem [shape: f32[1,128], index: 3, kind: input, shape index: {}]
  %s4 = inlined_call_operand.vmem [shape: f32[1,128], index: 4, kind: input, shape index: {}]
  %s5 = inlined_call_operand.vmem [shape: f32[16,128], index: 5, kind: output, shape index: {}]
  %s6 = sld [smem:[#allocation0]]
  $region38: #{forward.11} parent=0
    _
  %s8 = ssub.s32 1, %s6
  %s9 = scalar_select 0, %s8, %s6
  // Predicated region
  $region2: #{forward.11} parent=0 // pred_check
    _
  $region3: #{forward.11} parent=0 // pred_check_branch
    %11 = sbr.rel (0) target = $region5
  $region4: #{forward.11} parent=0 // pred_region
    _
  $region5: #{forward.11} parent=0 // pred_fallthru
    _
  // Predicated region
  $region6: #{forward.11} parent=0 // pred_check
    _
  $region7: #{forward.11} parent=0 // pred_check_branch
    %13 = sbr.rel (0) target = $region9
  $region8: #{forward.11} parent=0 // pred_region
    _
  $region9: #{forward.11} parent=0 // pred_fallthru
    _
  // Predicated region
  $region10: #{forward.11} parent=0 // pred_check
    _
  $region11: #{forward.11} parent=0 // pred_check_branch
    %15 = sbr.rel (0) target = $region13
  $region12: #{forward.11} parent=0 // pred_region
    _
  $region13: #{forward.11} parent=0 // pred_fallthru
    _
  // Predicated region
  $region14: #{forward.11} parent=0 // pred_check
    _
  $region15: #{forward.11} parent=0 // pred_check_branch
    %17 = sbr.rel (0) target = $region17
  $region16: #{forward.11} parent=0 // pred_region
    _
  $region17: #{forward.11} parent=0 // pred_fallthru
    _
  // Predicated region
  $region18: #{forward.11} parent=0 // pred_check
    _
  $region19: #{forward.11} parent=0 // pred_check_branch
    %19 = sbr.rel (0) target = $region21
  $region20: #{forward.11} parent=0 // pred_region
    _
  $region21: #{forward.11} parent=0 // pred_fallthru
    _
  %p20 = scmp.eq.s32.totalorder 0, 0
  // Predicated region
  $region22: #{forward.11} parent=0 // pred_check
    %p21 = pneg %p20
  $region23: #{forward.11} parent=0 // pred_check_branch
    %23 = sbr.rel (%p21) target = $region25
  $region24: #{forward.11} parent=0 // pred_region
    %24 = vst [vmem:[#allocation2] sm:$0xff] 0.0
    %25 = vst [vmem:[#allocation2 + $0x8] sm:$0xff] 0.0
  $region25: #{forward.11} parent=0 // pred_fallthru
    _
  %v26 = vld [vmem:[%s0] sm:$0xff]
  %v27 = vld [vmem:[%s0 + $0x8] sm:$0xff]
  %v28 = vlaneseq
  %v29 = vand.u32 %v28, 127
  %vm30 = vcmp.lt.s32.totalorder %v29, 32
  %v31 = vsel %vm30, %v26, 0.0
  %v32 = vsel %vm30, %v27, 0.0
  %33 = vadd.xlane.f32.xlu0 %v31
  %v34 = vpop.xlane.xlu0 %33
  %35 = vadd.xlane.f32.xlu0 %v32
  %v36 = vpop.xlane.xlu0 %35
  %v37 = vmul.f32 %v34, 0.03125
  %v38 = vmul.f32 %v36, 0.03125
  %v39 = vsub.f32 %v31, %v37
  %v40 = vsub.f32 %v32, %v38
  %v41 = vsel %vm30, %v39, 0.0
  %v42 = vsel %vm30, %v40, 0.0
  %v43 = vmul.f32 %v41, %v41
  %v44 = vmul.f32 %v42, %v42
  %45 = vadd.xlane.f32.xlu0 %v43
  %v46 = vpop.xlane.xlu0 %45
  %47 = vadd.xlane.f32.xlu0 %v44
  %v48 = vpop.xlane.xlu0 %47
  %v49 = vmul.f32 %v46, 0.03125
  %v50 = vmul.f32 %v48, 0.03125
  %v51 = vadd.f32 %v49, 1e-06
  %v52 = vadd.f32 %v50, 1e-06
  %v53 = vrsqrt.pop %v51
  %v54 = vmul.f32 %v53, %v51
  %v55 = vmul.f32 %v54, %v53
  %v56 = vmul.f32 0.5, %v55
  %v57 = vsub.f32 1.5, %v56
  %v58 = vmul.f32 %v53, %v57
  %vm59 = vweird.f32 %v51
  %vm60 = vweird.f32 %v53
  %vm61 = vmor %vm59, %vm60
  %v62 = vsel %vm61, %v53, %v58
  %v63 = vrsqrt.pop %v52
  %v64 = vmul.f32 %v63, %v52
  %v65 = vmul.f32 %v64, %v63
  %v66 = vmul.f32 0.5, %v65
  %v67 = vsub.f32 1.5, %v66
  %v68 = vmul.f32 %v63, %v67
  %vm69 = vweird.f32 %v52
  %vm70 = vweird.f32 %v63
  %vm71 = vmor %vm69, %vm70
  %v72 = vsel %vm71, %v63, %v68
  %v73 = vmul.f32 %v41, %v62
  %v74 = vmul.f32 %v42, %v72
  %v75 = vld [vmem:[%s3] sm:$0x1]
  %v77 = vperm.slane %v75, 0
  %v79 = vmul.f32 %v73, %v77
  %v80 = vmul.f32 %v74, %v77
  %v81 = vld [vmem:[%s4] sm:$0x1]
  %v83 = vperm.slane %v81, 0
  %v85 = vadd.f32 %v79, %v83
  %v86 = vadd.f32 %v80, %v83
  %v87 = vld [vmem:[#allocation2] sm:$0xff]
  %v88 = vld [vmem:[#allocation2 + $0x8] sm:$0xff]
  %v89 = vpack.c.bf16 %v86, %v85
  %v90 = vld [vmem:[%s1] sm:$0xf]
  %v91 = vld [vmem:[%s1 + $0x4] sm:$0xf]
  %v92 = vld [vmem:[%s1 + $0x8] sm:$0xf]
  %v93 = vld [vmem:[%s1 + $0xc] sm:$0xf]
  %v94 = vld [vmem:[%s1 + $0x10] sm:$0xf]
  %v95 = vld [vmem:[%s1 + $0x14] sm:$0xf]
  %v96 = vld [vmem:[%s1 + $0x18] sm:$0xf]
  %v97 = vld [vmem:[%s1 + $0x1c] sm:$0xf]
  %v98 = vld [vmem:[%s1 + $0x20] sm:$0xf]
  %v99 = vld [vmem:[%s1 + $0x24] sm:$0xf]
  %v100 = vld [vmem:[%s1 + $0x28] sm:$0xf]
  %v101 = vld [vmem:[%s1 + $0x2c] sm:$0xf]
  %v102 = vld [vmem:[%s1 + $0x30] sm:$0xf]
  %v103 = vld [vmem:[%s1 + $0x34] sm:$0xf]
  %v104 = vld [vmem:[%s1 + $0x38] sm:$0xf]
  %v105 = vld [vmem:[%s1 + $0x3c] sm:$0xf]
  %v122 = vunpack.c.l.b16 %v90
  %v123 = vunpack.c.l.b16 %v91
  %v124 = vunpack.c.l.b16 %v92
  %v125 = vunpack.c.l.b16 %v93
  %v126 = vunpack.c.l.b16 %v94
  %v127 = vunpack.c.l.b16 %v95
  %v128 = vunpack.c.l.b16 %v96
  %v129 = vunpack.c.l.b16 %v97
  %v130 = vunpack.c.l.b16 %v98
  %v131 = vunpack.c.l.b16 %v99
  %v132 = vunpack.c.l.b16 %v100
  %v133 = vunpack.c.l.b16 %v101
  %v134 = vunpack.c.l.b16 %v102
  %v135 = vunpack.c.l.b16 %v103
  %v136 = vunpack.c.l.b16 %v104
  %v137 = vunpack.c.l.b16 %v105
  %v138 = vpack.c.b16 %v123, %v122
  %v139 = vpack.c.b16 %v125, %v124
  %v140 = vpack.c.b16 %v127, %v126
  %v141 = vpack.c.b16 %v129, %v128
  %v142 = vpack.c.b16 %v131, %v130
  %v143 = vpack.c.b16 %v133, %v132
  %v144 = vpack.c.b16 %v135, %v134
  %v145 = vpack.c.b16 %v137, %v136
  %154 = vmatpush.bf16.msra.mxu0 %v145
  %155 = vmatpush.bf16.msra.mxu0 %v144
  %156 = vmatpush.bf16.msra.mxu0 %v143
  %157 = vmatpush.bf16.msra.mxu0 %v142
  %158 = vmatpush.bf16.msra.mxu0 %v141
  %159 = vmatpush.bf16.msra.mxu0 %v140
  %160 = vmatpush.bf16.msra.mxu0 %v139
  %161 = vmatpush.bf16.msra.mxu0 %v138
  %162 = vmatmul.bf16.gmra.mxu0 %v89
  %v163 = vpop.f32.mrf.mxu0
  %v164 = vadd.f32 0.0, %v163
  %v165 = vpop.f32.mrf.mxu0
  %v166 = vadd.f32 0.0, %v165
  %167 = vdwg.mxu0
  %v168 = vadd.f32 %v87, %v164
  %v169 = vadd.f32 %v88, %v166
  %170 = vst [vmem:[#allocation2] sm:$0xff] %v168
  %171 = vst [vmem:[#allocation2 + $0x8] sm:$0xff] %v169
  // Predicated region
  $region26: #{forward.11} parent=0 // pred_check
    %p172 = pneg %p20
  $region27: #{forward.11} parent=0 // pred_check_branch
    %174 = sbr.rel (%p172) target = $region29
  $region28: #{forward.11} parent=0 // pred_region
    %v175 = vld [vmem:[#allocation2] sm:$0xff]
    %v176 = vld [vmem:[#allocation2 + $0x8] sm:$0xff]
    %v177 = vld [vmem:[%s2] sm:$0x1]
    %v179 = vperm.slane %v177, 0
    %v181 = vadd.f32 %v175, %v179
    %v182 = vadd.f32 %v176, %v179
    %v183 = vmul.f32 %v181, %v181
    %v184 = vmul.f32 %v182, %v182
    %v185 = vmul.f32 %v181, %v183
    %v186 = vmul.f32 %v182, %v184
    %v187 = vmul.f32 %v185, 0.044715
    %v188 = vmul.f32 %v186, 0.044715
    %v189 = vadd.f32 %v181, %v187
    %v190 = vadd.f32 %v182, %v188
    %v191 = vmul.f32 %v189, 0.7978846
    %v192 = vmul.f32 %v190, 0.7978846
    %v193 = vtanh.pop %v191
    %v194 = vtanh.pop %v192
    %v195 = vadd.f32 %v193, 1.0
    %v196 = vadd.f32 %v194, 1.0
    %v197 = vmul.f32 %v195, 0.5
    %v198 = vmul.f32 %v196, 0.5
    %v199 = vmul.f32 %v181, %v197
    %v200 = vmul.f32 %v182, %v198
    %201 = vst [vmem:[%s5] sm:$0xff] %v199
    %202 = vst [vmem:[%s5 + $0x8] sm:$0xff] %v200
  $region29: #{forward.11} parent=0 // pred_fallthru
    _
  // Predicated region
  $region30: #{forward.11} parent=0 // pred_check
    _
  $region31: #{forward.11} parent=0 // pred_check_branch
    %204 = sbr.rel (0) target = $region33
  $region32: #{forward.11} parent=0 // pred_region
    _
  $region33: #{forward.11} parent=0 // pred_fallthru
    _
  // Predicated region
  $region34: #{forward.11} parent=0 // pred_check
    _
  $region35: #{forward.11} parent=0 // pred_check_branch
    %206 = sbr.rel (0) target = $region37
  $region36: #{forward.11} parent=0 // pred_region
    _
  $region37: #{forward.11} parent=0 // pred_fallthru
    _

// kernel: forward.13
$region0: #{forward.13}
  #allocation0 [shape = 'u32[]', space=smem, size = 0x4, offset = 0x4, fixed_abs, tag = 'smem constant byte address 0x4 - core index']
  #allocation1 [shape = 'u32[72,128]{1,0:T(1,128)}', space=vmem, size = 0x9000, scoped, tag = 'internal scratch']
  #allocation2 [shape = 'f32[16,128]{1,0:T(8,128)}', space=vmem, size = 0x2000, scoped, tag = 'scratch operand']
  %s0 = inlined_call_operand.vmem [shape: f32[16,128], index: 0, kind: input, shape index: {}]
  %s1 = inlined_call_operand.vmem [shape: bf16[128,128], index: 1, kind: input, shape index: {}]
  %s2 = inlined_call_operand.vmem [shape: f32[1,128], index: 2, kind: input, shape index: {}]
  %s3 = inlined_call_operand.vmem [shape: f32[1,128], index: 3, kind: input, shape index: {}]
  %s4 = inlined_call_operand.vmem [shape: f32[1,128], index: 4, kind: input, shape index: {}]
  %s5 = inlined_call_operand.vmem [shape: f32[16,128], index: 5, kind: output, shape index: {}]
  %s6 = sld [smem:[#allocation0]]
  $region38: #{forward.13} parent=0
    _
  %s8 = ssub.s32 1, %s6
  %s9 = scalar_select 0, %s8, %s6
  // Predicated region
  $region2: #{forward.13} parent=0 // pred_check
    _
  $region3: #{forward.13} parent=0 // pred_check_branch
    %11 = sbr.rel (0) target = $region5
  $region4: #{forward.13} parent=0 // pred_region
    _
  $region5: #{forward.13} parent=0 // pred_fallthru
    _
  // Predicated region
  $region6: #{forward.13} parent=0 // pred_check
    _
  $region7: #{forward.13} parent=0 // pred_check_branch
    %13 = sbr.rel (0) target = $region9
  $region8: #{forward.13} parent=0 // pred_region
    _
  $region9: #{forward.13} parent=0 // pred_fallthru
    _
  // Predicated region
  $region10: #{forward.13} parent=0 // pred_check
    _
  $region11: #{forward.13} parent=0 // pred_check_branch
    %15 = sbr.rel (0) target = $region13
  $region12: #{forward.13} parent=0 // pred_region
    _
  $region13: #{forward.13} parent=0 // pred_fallthru
    _
  // Predicated region
  $region14: #{forward.13} parent=0 // pred_check
    _
  $region15: #{forward.13} parent=0 // pred_check_branch
    %17 = sbr.rel (0) target = $region17
  $region16: #{forward.13} parent=0 // pred_region
    _
  $region17: #{forward.13} parent=0 // pred_fallthru
    _
  // Predicated region
  $region18: #{forward.13} parent=0 // pred_check
    _
  $region19: #{forward.13} parent=0 // pred_check_branch
    %19 = sbr.rel (0) target = $region21
  $region20: #{forward.13} parent=0 // pred_region
    _
  $region21: #{forward.13} parent=0 // pred_fallthru
    _
  %p20 = scmp.eq.s32.totalorder 0, 0
  // Predicated region
  $region22: #{forward.13} parent=0 // pred_check
    %p21 = pneg %p20
  $region23: #{forward.13} parent=0 // pred_check_branch
    %23 = sbr.rel (%p21) target = $region25
  $region24: #{forward.13} parent=0 // pred_region
    %24 = vst [vmem:[#allocation2] sm:$0xff] 0.0
    %25 = vst [vmem:[#allocation2 + $0x8] sm:$0xff] 0.0
  $region25: #{forward.13} parent=0 // pred_fallthru
    _
  %v26 = vld [vmem:[%s0] sm:$0xff]
  %v27 = vld [vmem:[%s0 + $0x8] sm:$0xff]
  %v28 = vlaneseq
  %v29 = vand.u32 %v28, 127
  %vm30 = vcmp.lt.s32.totalorder %v29, 32
  %v31 = vsel %vm30, %v26, 0.0
  %v32 = vsel %vm30, %v27, 0.0
  %33 = vadd.xlane.f32.xlu0 %v31
  %v34 = vpop.xlane.xlu0 %33
  %35 = vadd.xlane.f32.xlu0 %v32
  %v36 = vpop.xlane.xlu0 %35
  %v37 = vmul.f32 %v34, 0.03125
  %v38 = vmul.f32 %v36, 0.03125
  %v39 = vsub.f32 %v31, %v37
  %v40 = vsub.f32 %v32, %v38
  %v41 = vsel %vm30, %v39, 0.0
  %v42 = vsel %vm30, %v40, 0.0
  %v43 = vmul.f32 %v41, %v41
  %v44 = vmul.f32 %v42, %v42
  %45 = vadd.xlane.f32.xlu0 %v43
  %v46 = vpop.xlane.xlu0 %45
  %47 = vadd.xlane.f32.xlu0 %v44
  %v48 = vpop.xlane.xlu0 %47
  %v49 = vmul.f32 %v46, 0.03125
  %v50 = vmul.f32 %v48, 0.03125
  %v51 = vadd.f32 %v49, 1e-06
  %v52 = vadd.f32 %v50, 1e-06
  %v53 = vrsqrt.pop %v51
  %v54 = vmul.f32 %v53, %v51
  %v55 = vmul.f32 %v54, %v53
  %v56 = vmul.f32 0.5, %v55
  %v57 = vsub.f32 1.5, %v56
  %v58 = vmul.f32 %v53, %v57
  %vm59 = vweird.f32 %v51
  %vm60 = vweird.f32 %v53
  %vm61 = vmor %vm59, %vm60
  %v62 = vsel %vm61, %v53, %v58
  %v63 = vrsqrt.pop %v52
  %v64 = vmul.f32 %v63, %v52
  %v65 = vmul.f32 %v64, %v63
  %v66 = vmul.f32 0.5, %v65
  %v67 = vsub.f32 1.5, %v66
  %v68 = vmul.f32 %v63, %v67
  %vm69 = vweird.f32 %v52
  %vm70 = vweird.f32 %v63
  %vm71 = vmor %vm69, %vm70
  %v72 = vsel %vm71, %v63, %v68
  %v73 = vmul.f32 %v41, %v62
  %v74 = vmul.f32 %v42, %v72
  %v75 = vld [vmem:[%s3] sm:$0x1]
  %v77 = vperm.slane %v75, 0
  %v79 = vmul.f32 %v73, %v77
  %v80 = vmul.f32 %v74, %v77
  %v81 = vld [vmem:[%s4] sm:$0x1]
  %v83 = vperm.slane %v81, 0
  %v85 = vadd.f32 %v79, %v83
  %v86 = vadd.f32 %v80, %v83
  %v87 = vld [vmem:[#allocation2] sm:$0xff]
  %v88 = vld [vmem:[#allocation2 + $0x8] sm:$0xff]
  %v89 = vpack.c.bf16 %v86, %v85
  %v90 = vld [vmem:[%s1] sm:$0xf]
  %v91 = vld [vmem:[%s1 + $0x4] sm:$0xf]
  %v92 = vld [vmem:[%s1 + $0x8] sm:$0xf]
  %v93 = vld [vmem:[%s1 + $0xc] sm:$0xf]
  %v94 = vld [vmem:[%s1 + $0x10] sm:$0xf]
  %v95 = vld [vmem:[%s1 + $0x14] sm:$0xf]
  %v96 = vld [vmem:[%s1 + $0x18] sm:$0xf]
  %v97 = vld [vmem:[%s1 + $0x1c] sm:$0xf]
  %v98 = vld [vmem:[%s1 + $0x20] sm:$0xf]
  %v99 = vld [vmem:[%s1 + $0x24] sm:$0xf]
  %v100 = vld [vmem:[%s1 + $0x28] sm:$0xf]
  %v101 = vld [vmem:[%s1 + $0x2c] sm:$0xf]
  %v102 = vld [vmem:[%s1 + $0x30] sm:$0xf]
  %v103 = vld [vmem:[%s1 + $0x34] sm:$0xf]
  %v104 = vld [vmem:[%s1 + $0x38] sm:$0xf]
  %v105 = vld [vmem:[%s1 + $0x3c] sm:$0xf]
  %v122 = vunpack.c.l.b16 %v90
  %v123 = vunpack.c.l.b16 %v91
  %v124 = vunpack.c.l.b16 %v92
  %v125 = vunpack.c.l.b16 %v93
  %v126 = vunpack.c.l.b16 %v94
  %v127 = vunpack.c.l.b16 %v95
  %v128 = vunpack.c.l.b16 %v96
  %v129 = vunpack.c.l.b16 %v97
  %v130 = vunpack.c.l.b16 %v98
  %v131 = vunpack.c.l.b16 %v99
  %v132 = vunpack.c.l.b16 %v100
  %v133 = vunpack.c.l.b16 %v101
  %v134 = vunpack.c.l.b16 %v102
  %v135 = vunpack.c.l.b16 %v103
  %v136 = vunpack.c.l.b16 %v104
  %v137 = vunpack.c.l.b16 %v105
  %v138 = vpack.c.b16 %v123, %v122
  %v139 = vpack.c.b16 %v125, %v124
  %v140 = vpack.c.b16 %v127, %v126
  %v141 = vpack.c.b16 %v129, %v128
  %v142 = vpack.c.b16 %v131, %v130
  %v143 = vpack.c.b16 %v133, %v132
  %v144 = vpack.c.b16 %v135, %v134
  %v145 = vpack.c.b16 %v137, %v136
  %154 = vmatpush.bf16.msra.mxu0 %v145
  %155 = vmatpush.bf16.msra.mxu0 %v144
  %156 = vmatpush.bf16.msra.mxu0 %v143
  %157 = vmatpush.bf16.msra.mxu0 %v142
  %158 = vmatpush.bf16.msra.mxu0 %v141
  %159 = vmatpush.bf16.msra.mxu0 %v140
  %160 = vmatpush.bf16.msra.mxu0 %v139
  %161 = vmatpush.bf16.msra.mxu0 %v138
  %162 = vmatmul.bf16.gmra.mxu0 %v89
  %v163 = vpop.f32.mrf.mxu0
  %v164 = vadd.f32 0.0, %v163
  %v165 = vpop.f32.mrf.mxu0
  %v166 = vadd.f32 0.0, %v165
  %167 = vdwg.mxu0
  %v168 = vadd.f32 %v87, %v164
  %v169 = vadd.f32 %v88, %v166
  %170 = vst [vmem:[#allocation2] sm:$0xff] %v168
  %171 = vst [vmem:[#allocation2 + $0x8] sm:$0xff] %v169
  // Predicated region
  $region26: #{forward.13} parent=0 // pred_check
    %p172 = pneg %p20
  $region27: #{forward.13} parent=0 // pred_check_branch
    %174 = sbr.rel (%p172) target = $region29
  $region28: #{forward.13} parent=0 // pred_region
    %v175 = vld [vmem:[#allocation2] sm:$0xff]
    %v176 = vld [vmem:[#allocation2 + $0x8] sm:$0xff]
    %v177 = vld [vmem:[%s2] sm:$0x1]
    %v179 = vperm.slane %v177, 0
    %v181 = vadd.f32 %v175, %v179
    %v182 = vadd.f32 %v176, %v179
    %183 = vst [vmem:[%s5] sm:$0xff] %v181
    %184 = vst [vmem:[%s5 + $0x8] sm:$0xff] %v182
  $region29: #{forward.13} parent=0 // pred_fallthru
    _
  // Predicated region
  $region30: #{forward.13} parent=0 // pred_check
    _
  $region31: #{forward.13} parent=0 // pred_check_branch
    %186 = sbr.rel (0) target = $region33
  $region32: #{forward.13} parent=0 // pred_region
    _
  $region33: #{forward.13} parent=0 // pred_fallthru
    _
  // Predicated region
  $region34: #{forward.13} parent=0 // pred_check
    _
  $region35: #{forward.13} parent=0 // pred_check_branch
    %188 = sbr.rel (0) target = $region37
  $region36: #{forward.13} parent=0 // pred_region
    _
  $region37: #{forward.13} parent=0 // pred_fallthru
    _

</llo_original>
